<compile_context>
chip_gen: v7x
topology: tpu7x:2x2x1
jax: 0.10.0
libtpu: 0.0.40
codegen_flags: <defaults>
</compile_context>

<pallas_src>
import jax
import jax.numpy as jnp
from jax.experimental import pallas as pl
from jax.experimental.pallas import tpu as pltpu


def _maxpool2x2_kernel(x_ref, o_ref):
    # x_ref: (2*tm, 2*Wo) -- 2*tm consecutive input rows (pairs (2j, 2j+1) form
    #                        the vertical extent of output row j), full width.
    # o_ref: (tm, Wo)
    tm, wo = o_ref.shape
    x = x_ref[...]                       # (2*tm, 2*Wo)
    x = x.reshape(tm, 2, 2 * wo)
    x = jnp.max(x, axis=1)               # max over the H-pair        -> (tm, 2*Wo)
    x = x.reshape(tm, wo, 2)
    o_ref[...] = jnp.max(x, axis=2)      # max over the W-pair (XLU)  -> (tm, Wo)


def _choose_tile_rows(m_out, w_in, itemsize, target_bytes=4 * 1024 * 1024):
    """Rows of *output* per block (input block is (2*tm, w_in))."""
    rows = max(1, target_bytes // max(1, 2 * w_in * itemsize))
    tm = (rows // 8) * 8                 # sublane-aligned
    if tm == 0:
        tm = 8
    tm = min(tm, m_out)
    # Make sure the "parallel" grid axis splits (>= 2 steps) when possible so
    # both v7x TensorCores get work.
    if m_out >= 16 and pl.cdiv(m_out, tm) < 2:
        tm = ((-(-m_out // 2) + 7) // 8) * 8
    return tm


def gmaxpool2d(x, group="p4"):
    """Pallas TPU implementation of GMaxPool2d.forward (MaxPool2d(kernel_size=2))."""
    if group != "p4":
        # Module only pools for group == 'p4'; otherwise passthrough.
        return x

    B, C, H, W = x.shape
    Ho, Wo = H // 2, W // 2              # stride 2, floor, no padding
    Hc, Wc = Ho * 2, Wo * 2
    xc = x[:, :, :Hc, :Wc]               # no-op slice for even H/W

    M = B * C * Ho                       # output rows
    # Free reshape for contiguous (even H/W) inputs: consecutive row pairs
    # (2j, 2j+1) are exactly the two H-rows feeding output row j.
    x2 = xc.reshape(M * 2, Wc)

    itemsize = jnp.dtype(x.dtype).itemsize
    tm = _choose_tile_rows(M, Wc, itemsize)
    grid = (pl.cdiv(M, tm),)

    out = pl.pallas_call(
        _maxpool2x2_kernel,
        out_shape=jax.ShapeDtypeStruct((M, Wo), x.dtype),
        grid_spec=pltpu.PrefetchScalarGridSpec(
            num_scalar_prefetch=0,
            grid=grid,
            in_specs=[pl.BlockSpec((2 * tm, Wc), lambda i: (i, 0))],
            out_specs=pl.BlockSpec((tm, Wo), lambda i: (i, 0)),
        ),
        compiler_params=pltpu.CompilerParams(
            dimension_semantics=("parallel",),
            vmem_limit_bytes=48 * 1024 * 1024,
        ),
    )(x2)

    return out.reshape(B, C, Ho, Wo)


def _maxpool2x2_ref(x):
    """Pure-JAX reference with MaxPool2d(kernel_size=2) semantics."""
    B, C, H, W = x.shape
    Ho, Wo = H // 2, W // 2
    xc = x[:, :, : Ho * 2, : Wo * 2]
    return jnp.max(xc.reshape(B, C, Ho, 2, Wo, 2), axis=(3, 5))


if __name__ == "__main__":
    key = jax.random.PRNGKey(0)
    k1, k2 = jax.random.split(key)

    # Main case: (2, 4, 16, 16) f32 -> (2, 4, 8, 8); grid splits into 2 blocks.
    x1 = jax.random.normal(k1, (2, 4, 16, 16), dtype=jnp.float32)
    y1 = jax.block_until_ready(gmaxpool2d(x1, group="p4"))
    assert y1.shape == (2, 4, 8, 8), y1.shape
    assert y1.dtype == x1.dtype
    assert jnp.allclose(y1, _maxpool2x2_ref(x1)), "mismatch vs reference (case 1)"

    # Ragged-grid / odd-width case: (2, 4, 18, 15) -> crop W to 14 -> (2, 4, 9, 7).
    x2 = jax.random.normal(k2, (2, 4, 18, 15), dtype=jnp.float32)
    y2 = jax.block_until_ready(gmaxpool2d(x2, group="p4"))
    assert y2.shape == (2, 4, 9, 7), y2.shape
    assert y2.dtype == x2.dtype
    assert jnp.allclose(y2, _maxpool2x2_ref(x2)), "mismatch vs reference (case 2)"

    # Non-'p4' group is a passthrough (matches module semantics).
    y3 = gmaxpool2d(x1, group="z2")
    assert y3.shape == x1.shape

    print("KERNEL_OK")
</pallas_src>

<mosaic_0001>
module attributes {stable_mosaic.version = 11 : i64} {
  func.func @_maxpool2x2_kernel(%arg0: i32, %arg1: memref<64x16xf32, #tpu.memory_space<vmem>>, %arg2: memref<32x8xf32, #tpu.memory_space<vmem>>) attributes {dimension_semantics = [#tpu.dimension_semantics<parallel>], iteration_bounds = array<i64: 2>, scalar_prefetch = 0 : i64, scratch_operands = 0 : i64, tpu.core_type = #tpu.core_type<tc>, window_params = [{transform_indices = @transform_0, window_bounds = array<i64: 64, 16>}, {transform_indices = @transform_1, window_bounds = array<i64: 32, 8>}]} {
    %c0 = arith.constant 0 : index
    %c0_0 = arith.constant 0 : index
    %0 = vector.load %arg1[%c0, %c0_0] : memref<64x16xf32, #tpu.memory_space<vmem>>, vector<64x16xf32>
    %1 = vector.shape_cast %0 : vector<64x16xf32> to vector<32x2x16xf32>
    %cst = arith.constant dense<0xFF800000> : vector<32x16xf32>
    %2 = vector.multi_reduction <maximumf>, %1, %cst [1] : vector<32x2x16xf32> to vector<32x16xf32>
    %3 = vector.shape_cast %2 : vector<32x16xf32> to vector<32x8x2xf32>
    %cst_1 = arith.constant dense<0xFF800000> : vector<32x8xf32>
    %4 = vector.multi_reduction <maximumf>, %3, %cst_1 [2] : vector<32x8x2xf32> to vector<32x8xf32>
    %c0_2 = arith.constant 0 : index
    %c0_3 = arith.constant 0 : index
    %5 = vector.load %arg2[%c0_2, %c0_3] : memref<32x8xf32, #tpu.memory_space<vmem>>, vector<32x8xf32>
    tpu.vector_store %arg2[%c0_2, %c0_3], %4 {strides = array<i32>} : memref<32x8xf32, #tpu.memory_space<vmem>>, vector<32x8xf32>,
    return
  }
  func.func @transform_0(%arg0: i32) -> (i32, i32) {
    %c0_i32 = arith.constant 0 : i32
    %c0_i32_0 = arith.constant 0 : i32
    return %arg0, %c0_i32 : i32, i32
  }
  func.func @transform_1(%arg0: i32) -> (i32, i32) {
    %c0_i32 = arith.constant 0 : i32
    %c0_i32_0 = arith.constant 0 : i32
    return %arg0, %c0_i32 : i32, i32
  }
}

</mosaic_0001>

<llo_original>
// kernel: tpu_custom_call.1
$region0: #{tpu_custom_call.1}
  #allocation0 [shape = 'u32[]', space=smem, size = 0x4, offset = 0x4, fixed_abs, tag = 'smem constant byte address 0x4 - core index']
  #allocation1 [shape = 'u32[144,128]{1,0:T(1,128)}', space=vmem, size = 0x12000, scoped, tag = 'internal scratch']
  %s0 = inlined_call_operand.vmem [shape: f32[128,16], index: 0, kind: input, shape index: {}]
  %s1 = inlined_call_operand.vmem [shape: f32[64,8], index: 1, kind: output, shape index: {}]
  %s2 = sld [smem:[#allocation0]]
  $region37: #{tpu_custom_call.1} parent=0
    _
  %s4 = ssub.s32 1, %s2
  %s5 = scalar_select 0, %s4, %s2
  loop: start=0, step=1, limit=4
  $region2: #{tpu_custom_call.1} parent=0 // loop_pre_header
    _
  $region3: #{tpu_custom_call.1} parent=0 // loop_header
    %s7 = sphi 0, %s11
    %p8 = scmp.ge.s32.totalorder %s7, 4
    %s17 = sphi 0, %s19
    %s20 = sphi 0, %s17
    %s21 = sphi 0, %s20
    %s37 = sphi 0, %s21
    %s43 = sphi 0, %s45
    %s46 = sphi 0, %s43
    %s47 = sphi 0, %s46
    %s63 = sphi 0, %s47
  $region4: #{tpu_custom_call.1} parent=0 // loop_header_branch
    %10 = sbr.rel (%p8) target = $region8
  $region5: #{tpu_custom_call.1} parent=0 // loop_body
    %s12 = ssub.s32 %s7, 1
    %s13 = ssub.s32 %s7, 2
    %s14 = sadd.s32 %s7, 1
    %s15 = ssub.s32 %s7, %s14
    %p16 = scmp.eq.s32.totalorder %s15, 0
    %s18 = sadd.s32 %s17, 1
    %s19 = scalar_select %p16, %s17, %s18
    %p22 = pneg %p16
    %p23 = scmp.eq.s32.totalorder %s7, 1
    %p24 = por %p22, %p23
    %p25 = scmp.ne.s32.totalorder %s17, %s20
    %p26 = scmp.eq.s32.totalorder %s7, 0
    %p27 = por %p25, %p26
    %p28 = scmp.ne.s32.totalorder %s17, %s20
    %p29 = scmp.eq.s32.totalorder %s12, 1
    %p30 = por %p28, %p29
    %p31 = scmp.ne.s32.totalorder %s20, %s21
    %p32 = scmp.eq.s32.totalorder %s12, 0
    %p33 = por %p31, %p32
    %p34 = scmp.ne.s32.totalorder %s20, %s21
    %p35 = scmp.eq.s32.totalorder %s13, 1
    %p36 = por %p34, %p35
    %p38 = scmp.ne.s32.totalorder %s21, %s37
    %p39 = scmp.eq.s32.totalorder %s13, 0
    %p40 = por %p38, %p39
    %s41 = ssub.s32 %s7, %s14
    %p42 = scmp.eq.s32.totalorder %s41, 0
    %s44 = sadd.s32 %s43, 1
    %s45 = scalar_select %p42, %s43, %s44
    %p48 = pneg %p42
    %p49 = scmp.eq.s32.totalorder %s7, 1
    %p50 = por %p48, %p49
    %p51 = scmp.ne.s32.totalorder %s43, %s46
    %p52 = scmp.eq.s32.totalorder %s7, 0
    %p53 = por %p51, %p52
    %p54 = scmp.ne.s32.totalorder %s43, %s46
    %p55 = scmp.eq.s32.totalorder %s12, 1
    %p56 = por %p54, %p55
    %p57 = scmp.ne.s32.totalorder %s46, %s47
    %p58 = scmp.eq.s32.totalorder %s12, 0
    %p59 = por %p57, %p58
    %p60 = scmp.ne.s32.totalorder %s46, %s47
    %p61 = scmp.eq.s32.totalorder %s13, 1
    %p62 = por %p60, %p61
    %p64 = scmp.ne.s32.totalorder %s47, %s63
    %p65 = scmp.eq.s32.totalorder %s13, 0
    %p66 = por %p64, %p65
    %p67 = scmp.le.s32.totalorder 1, %s7
    %p68 = scmp.lt.s32.totalorder %s7, 3
    %p69 = pnand %p67, %p68
    %p70 = pneg %p69
    // Predicated region
    $region9: #{tpu_custom_call.1} parent=5 // pred_check
      _
    $region10: #{tpu_custom_call.1} parent=5 // pred_check_branch
      %72 = sbr.rel (%p69) target = $region12
    $region11: #{tpu_custom_call.1} parent=5 // pred_region
      %s73 = ssub.s32 %s7, 1
    $region12: #{tpu_custom_call.1} parent=5 // pred_fallthru
      _
    %p74 = scmp.lt.s32.totalorder %s7, 2
    // Predicated region
    $region13: #{tpu_custom_call.1} parent=5 // pred_check
      %p75 = pneg %p74
    $region14: #{tpu_custom_call.1} parent=5 // pred_check_branch
      %77 = sbr.rel (%p75) target = $region16
    $region15: #{tpu_custom_call.1} parent=5 // pred_region
      // Predicated region
      $region17: #{tpu_custom_call.1} parent=15 // pred_check
        %p78 = pneg %p27
      $region18: #{tpu_custom_call.1} parent=15 // pred_check_branch
        %80 = sbr.rel (%p78) target = $region20
      $region19: #{tpu_custom_call.1} parent=15 // pred_region
        %s81 = smul.u32 8, %s7
        %p82 = scmp.lt.s32.totalorder %s81, 15
        %s83 = scalar_select %p82, %s81, 15
        %s84 = smul.addr %s83, 8
        %s85 = scalar_lea.vmem %s0, %s84
        %s86 = smul.u32 8, %s7
      $region20: #{tpu_custom_call.1} parent=15 // pred_fallthru
        _
    $region16: #{tpu_custom_call.1} parent=5 // pred_fallthru
      _
    %p87 = scmp.le.s32.totalorder 1, %s7
    %p88 = scmp.lt.s32.totalorder %s7, 3
    %p89 = pnand %p87, %p88
    %p90 = pneg %p89
    // Predicated region
    $region21: #{tpu_custom_call.1} parent=5 // pred_check
      _
    $region22: #{tpu_custom_call.1} parent=5 // pred_check_branch
      %92 = sbr.rel (%p89) target = $region24
    $region23: #{tpu_custom_call.1} parent=5 // pred_region
      %s93 = ssub.s32 %s7, 1
      %s94 = smul.u32 8, %s12
      %p95 = scmp.lt.s32.totalorder %s94, 15
      %s96 = scalar_select %p95, %s94, 15
      %s97 = smul.addr %s96, 8
      %s98 = scalar_lea.vmem %s0, %s97
      %p99 = pneg %p33
      %p100 = pneg %p30
      %p101 = pneg %p59
      %p102 = pneg %p56
      %s103 = smul.u32 4, %s12
      %p104 = scmp.lt.s32.totalorder %s103, 7
      %s105 = scalar_select %p104, %s103, 7
      %s106 = smul.addr %s105, 8
      %s107 = scalar_lea.vmem %s1, %s106
      %s108 = smul.u32 8, %s12
      %p109 = scmp.lt.s32.totalorder %s108, 15
      %s110 = scalar_select %p109, %s108, 15
      %s111 = smul.addr %s110, 8
      %s112 = scalar_lea.vmem %s0, %s111
      %s113 = smul.u32 8, %s12
      %s114 = smul.u32 4, %s12
      %p115 = scmp.lt.s32.totalorder %s114, 7
      %s116 = scalar_select %p115, %s114, 7
      %s117 = smul.addr %s116, 8
      %s118 = scalar_lea.vmem %s1, %s117
      %s119 = smul.u32 4, %s12
      %v120 = vld [vmem:[%s112] sm:$0xff]
      %v121 = vld [vmem:[%s112 + $0x8] sm:$0xff]
      %v122 = vld [vmem:[%s112 + $0x10] sm:$0xff]
      %v123 = vld [vmem:[%s112 + $0x18] sm:$0xff]
      %v124 = vld [vmem:[%s112 + $0x20] sm:$0xff]
      %v125 = vld [vmem:[%s112 + $0x28] sm:$0xff]
      %v126 = vld [vmem:[%s112 + $0x30] sm:$0xff]
      %v127 = vld [vmem:[%s112 + $0x38] sm:$0xff]
      %v136 = vcombine.high %v120, %v120
      %v138 = vunpack.c.l.s4 1983009808
      %v139 = vunpack.c.0.s8 %v138
      %v140 = vlaneseq
      %v141 = vshrl.u32 %v140, 7
      %v142 = vsub.s32 %v139, %v141
      %v143 = vrot.slane %v120, %v142
      %v145 = vunpack.c.l.s4 1983009808
      %v146 = vunpack.c.0.s8 %v145
      %v147 = vlaneseq
      %v148 = vshrl.u32 %v147, 7
      %v149 = vsub.s32 %v146, %v148
      %v150 = vrot.slane %v136, %v149
      %v151 = vcombine.high %v143, %v143
      %v152 = vcombine.high %v150, %v150
      %v153 = vcombine.high %v121, %v121
      %v155 = vunpack.c.l.s4 1983009808
      %v156 = vunpack.c.0.s8 %v155
      %v157 = vlaneseq
      %v158 = vshrl.u32 %v157, 7
      %v159 = vsub.s32 %v156, %v158
      %v160 = vrot.slane %v121, %v159
      %v162 = vunpack.c.l.s4 1983009808
      %v163 = vunpack.c.0.s8 %v162
      %v164 = vlaneseq
      %v165 = vshrl.u32 %v164, 7
      %v166 = vsub.s32 %v163, %v165
      %v167 = vrot.slane %v153, %v166
      %v168 = vcombine.high %v160, %v160
      %v169 = vcombine.high %v167, %v167
      %v170 = vcombine.high %v122, %v122
      %v172 = vunpack.c.l.s4 1983009808
      %v173 = vunpack.c.0.s8 %v172
      %v174 = vlaneseq
      %v175 = vshrl.u32 %v174, 7
      %v176 = vsub.s32 %v173, %v175
      %v177 = vrot.slane %v122, %v176
      %v179 = vunpack.c.l.s4 1983009808
      %v180 = vunpack.c.0.s8 %v179
      %v181 = vlaneseq
      %v182 = vshrl.u32 %v181, 7
      %v183 = vsub.s32 %v180, %v182
      %v184 = vrot.slane %v170, %v183
      %v185 = vcombine.high %v177, %v177
      %v186 = vcombine.high %v184, %v184
      %v187 = vcombine.high %v123, %v123
      %v189 = vunpack.c.l.s4 1983009808
      %v190 = vunpack.c.0.s8 %v189
      %v191 = vlaneseq
      %v192 = vshrl.u32 %v191, 7
      %v193 = vsub.s32 %v190, %v192
      %v194 = vrot.slane %v123, %v193
      %v196 = vunpack.c.l.s4 1983009808
      %v197 = vunpack.c.0.s8 %v196
      %v198 = vlaneseq
      %v199 = vshrl.u32 %v198, 7
      %v200 = vsub.s32 %v197, %v199
      %v201 = vrot.slane %v187, %v200
      %v202 = vcombine.high %v194, %v194
      %v203 = vcombine.high %v201, %v201
      %v204 = vcombine.high %v124, %v124
      %v206 = vunpack.c.l.s4 1983009808
      %v207 = vunpack.c.0.s8 %v206
      %v208 = vlaneseq
      %v209 = vshrl.u32 %v208, 7
      %v210 = vsub.s32 %v207, %v209
      %v211 = vrot.slane %v124, %v210
      %v213 = vunpack.c.l.s4 1983009808
      %v214 = vunpack.c.0.s8 %v213
      %v215 = vlaneseq
      %v216 = vshrl.u32 %v215, 7
      %v217 = vsub.s32 %v214, %v216
      %v218 = vrot.slane %v204, %v217
      %v219 = vcombine.high %v211, %v211
      %v220 = vcombine.high %v218, %v218
      %v221 = vcombine.high %v125, %v125
      %v223 = vunpack.c.l.s4 1983009808
      %v224 = vunpack.c.0.s8 %v223
      %v225 = vlaneseq
      %v226 = vshrl.u32 %v225, 7
      %v227 = vsub.s32 %v224, %v226
      %v228 = vrot.slane %v125, %v227
      %v230 = vunpack.c.l.s4 1983009808
      %v231 = vunpack.c.0.s8 %v230
      %v232 = vlaneseq
      %v233 = vshrl.u32 %v232, 7
      %v234 = vsub.s32 %v231, %v233
      %v235 = vrot.slane %v221, %v234
      %v236 = vcombine.high %v228, %v228
      %v237 = vcombine.high %v235, %v235
      %v238 = vcombine.high %v126, %v126
      %v240 = vunpack.c.l.s4 1983009808
      %v241 = vunpack.c.0.s8 %v240
      %v242 = vlaneseq
      %v243 = vshrl.u32 %v242, 7
      %v244 = vsub.s32 %v241, %v243
      %v245 = vrot.slane %v126, %v244
      %v247 = vunpack.c.l.s4 1983009808
      %v248 = vunpack.c.0.s8 %v247
      %v249 = vlaneseq
      %v250 = vshrl.u32 %v249, 7
      %v251 = vsub.s32 %v248, %v250
      %v252 = vrot.slane %v238, %v251
      %v253 = vcombine.high %v245, %v245
      %v254 = vcombine.high %v252, %v252
      %v255 = vcombine.high %v127, %v127
      %v257 = vunpack.c.l.s4 1983009808
      %v258 = vunpack.c.0.s8 %v257
      %v259 = vlaneseq
      %v260 = vshrl.u32 %v259, 7
      %v261 = vsub.s32 %v258, %v260
      %v262 = vrot.slane %v127, %v261
      %v264 = vunpack.c.l.s4 1983009808
      %v265 = vunpack.c.0.s8 %v264
      %v266 = vlaneseq
      %v267 = vshrl.u32 %v266, 7
      %v268 = vsub.s32 %v265, %v267
      %v269 = vrot.slane %v255, %v268
      %v270 = vcombine.high %v262, %v262
      %v271 = vcombine.high %v269, %v269
      %vm304 = vcmask 123904
      %v305 = vsel %vm304, %v143, -inf
      %v306 = vrot.slane %v305, 4
      %v307 = vmax.f32 %v305, %v306
      %v308 = vrot.slane %v307, 2
      %v309 = vmax.f32 %v307, %v308
      %v310 = vrot.slane %v309, 1
      %v311 = vmax.f32 %v309, %v310
      %v312 = vsel %vm304, %v151, -inf
      %v313 = vrot.slane %v312, 4
      %v314 = vmax.f32 %v312, %v313
      %v315 = vrot.slane %v314, 2
      %v316 = vmax.f32 %v314, %v315
      %v317 = vrot.slane %v316, 1
      %v318 = vmax.f32 %v316, %v317
      %v319 = vsel %vm304, %v150, -inf
      %v320 = vrot.slane %v319, 4
      %v321 = vmax.f32 %v319, %v320
      %v322 = vrot.slane %v321, 2
      %v323 = vmax.f32 %v321, %v322
      %v324 = vrot.slane %v323, 1
      %v325 = vmax.f32 %v323, %v324
      %v326 = vsel %vm304, %v152, -inf
      %v327 = vrot.slane %v326, 4
      %v328 = vmax.f32 %v326, %v327
      %v329 = vrot.slane %v328, 2
      %v330 = vmax.f32 %v328, %v329
      %v331 = vrot.slane %v330, 1
      %v332 = vmax.f32 %v330, %v331
      %v333 = vsel %vm304, %v160, -inf
      %v334 = vrot.slane %v333, 4
      %v335 = vmax.f32 %v333, %v334
      %v336 = vrot.slane %v335, 2
      %v337 = vmax.f32 %v335, %v336
      %v338 = vrot.slane %v337, 1
      %v339 = vmax.f32 %v337, %v338
      %v340 = vsel %vm304, %v168, -inf
      %v341 = vrot.slane %v340, 4
      %v342 = vmax.f32 %v340, %v341
      %v343 = vrot.slane %v342, 2
      %v344 = vmax.f32 %v342, %v343
      %v345 = vrot.slane %v344, 1
      %v346 = vmax.f32 %v344, %v345
      %v347 = vsel %vm304, %v167, -inf
      %v348 = vrot.slane %v347, 4
      %v349 = vmax.f32 %v347, %v348
      %v350 = vrot.slane %v349, 2
      %v351 = vmax.f32 %v349, %v350
      %v352 = vrot.slane %v351, 1
      %v353 = vmax.f32 %v351, %v352
      %v354 = vsel %vm304, %v169, -inf
      %v355 = vrot.slane %v354, 4
      %v356 = vmax.f32 %v354, %v355
      %v357 = vrot.slane %v356, 2
      %v358 = vmax.f32 %v356, %v357
      %v359 = vrot.slane %v358, 1
      %v360 = vmax.f32 %v358, %v359
      %v361 = vsel %vm304, %v177, -inf
      %v362 = vrot.slane %v361, 4
      %v363 = vmax.f32 %v361, %v362
      %v364 = vrot.slane %v363, 2
      %v365 = vmax.f32 %v363, %v364
      %v366 = vrot.slane %v365, 1
      %v367 = vmax.f32 %v365, %v366
      %v368 = vsel %vm304, %v185, -inf
      %v369 = vrot.slane %v368, 4
      %v370 = vmax.f32 %v368, %v369
      %v371 = vrot.slane %v370, 2
      %v372 = vmax.f32 %v370, %v371
      %v373 = vrot.slane %v372, 1
      %v374 = vmax.f32 %v372, %v373
      %v375 = vsel %vm304, %v184, -inf
      %v376 = vrot.slane %v375, 4
      %v377 = vmax.f32 %v375, %v376
      %v378 = vrot.slane %v377, 2
      %v379 = vmax.f32 %v377, %v378
      %v380 = vrot.slane %v379, 1
      %v381 = vmax.f32 %v379, %v380
      %v382 = vsel %vm304, %v186, -inf
      %v383 = vrot.slane %v382, 4
      %v384 = vmax.f32 %v382, %v383
      %v385 = vrot.slane %v384, 2
      %v386 = vmax.f32 %v384, %v385
      %v387 = vrot.slane %v386, 1
      %v388 = vmax.f32 %v386, %v387
      %v389 = vsel %vm304, %v194, -inf
      %v390 = vrot.slane %v389, 4
      %v391 = vmax.f32 %v389, %v390
      %v392 = vrot.slane %v391, 2
      %v393 = vmax.f32 %v391, %v392
      %v394 = vrot.slane %v393, 1
      %v395 = vmax.f32 %v393, %v394
      %v396 = vsel %vm304, %v202, -inf
      %v397 = vrot.slane %v396, 4
      %v398 = vmax.f32 %v396, %v397
      %v399 = vrot.slane %v398, 2
      %v400 = vmax.f32 %v398, %v399
      %v401 = vrot.slane %v400, 1
      %v402 = vmax.f32 %v400, %v401
      %v403 = vsel %vm304, %v201, -inf
      %v404 = vrot.slane %v403, 4
      %v405 = vmax.f32 %v403, %v404
      %v406 = vrot.slane %v405, 2
      %v407 = vmax.f32 %v405, %v406
      %v408 = vrot.slane %v407, 1
      %v409 = vmax.f32 %v407, %v408
      %v410 = vsel %vm304, %v203, -inf
      %v411 = vrot.slane %v410, 4
      %v412 = vmax.f32 %v410, %v411
      %v413 = vrot.slane %v412, 2
      %v414 = vmax.f32 %v412, %v413
      %v415 = vrot.slane %v414, 1
      %v416 = vmax.f32 %v414, %v415
      %v417 = vsel %vm304, %v211, -inf
      %v418 = vrot.slane %v417, 4
      %v419 = vmax.f32 %v417, %v418
      %v420 = vrot.slane %v419, 2
      %v421 = vmax.f32 %v419, %v420
      %v422 = vrot.slane %v421, 1
      %v423 = vmax.f32 %v421, %v422
      %v424 = vsel %vm304, %v219, -inf
      %v425 = vrot.slane %v424, 4
      %v426 = vmax.f32 %v424, %v425
      %v427 = vrot.slane %v426, 2
      %v428 = vmax.f32 %v426, %v427
      %v429 = vrot.slane %v428, 1
      %v430 = vmax.f32 %v428, %v429
      %v431 = vsel %vm304, %v218, -inf
      %v432 = vrot.slane %v431, 4
      %v433 = vmax.f32 %v431, %v432
      %v434 = vrot.slane %v433, 2
      %v435 = vmax.f32 %v433, %v434
      %v436 = vrot.slane %v435, 1
      %v437 = vmax.f32 %v435, %v436
      %v438 = vsel %vm304, %v220, -inf
      %v439 = vrot.slane %v438, 4
      %v440 = vmax.f32 %v438, %v439
      %v441 = vrot.slane %v440, 2
      %v442 = vmax.f32 %v440, %v441
      %v443 = vrot.slane %v442, 1
      %v444 = vmax.f32 %v442, %v443
      %v445 = vsel %vm304, %v228, -inf
      %v446 = vrot.slane %v445, 4
      %v447 = vmax.f32 %v445, %v446
      %v448 = vrot.slane %v447, 2
      %v449 = vmax.f32 %v447, %v448
      %v450 = vrot.slane %v449, 1
      %v451 = vmax.f32 %v449, %v450
      %v452 = vsel %vm304, %v236, -inf
      %v453 = vrot.slane %v452, 4
      %v454 = vmax.f32 %v452, %v453
      %v455 = vrot.slane %v454, 2
      %v456 = vmax.f32 %v454, %v455
      %v457 = vrot.slane %v456, 1
      %v458 = vmax.f32 %v456, %v457
      %v459 = vsel %vm304, %v235, -inf
      %v460 = vrot.slane %v459, 4
      %v461 = vmax.f32 %v459, %v460
      %v462 = vrot.slane %v461, 2
      %v463 = vmax.f32 %v461, %v462
      %v464 = vrot.slane %v463, 1
      %v465 = vmax.f32 %v463, %v464
      %v466 = vsel %vm304, %v237, -inf
      %v467 = vrot.slane %v466, 4
      %v468 = vmax.f32 %v466, %v467
      %v469 = vrot.slane %v468, 2
      %v470 = vmax.f32 %v468, %v469
      %v471 = vrot.slane %v470, 1
      %v472 = vmax.f32 %v470, %v471
      %v473 = vsel %vm304, %v245, -inf
      %v474 = vrot.slane %v473, 4
      %v475 = vmax.f32 %v473, %v474
      %v476 = vrot.slane %v475, 2
      %v477 = vmax.f32 %v475, %v476
      %v478 = vrot.slane %v477, 1
      %v479 = vmax.f32 %v477, %v478
      %v480 = vsel %vm304, %v253, -inf
      %v481 = vrot.slane %v480, 4
      %v482 = vmax.f32 %v480, %v481
      %v483 = vrot.slane %v482, 2
      %v484 = vmax.f32 %v482, %v483
      %v485 = vrot.slane %v484, 1
      %v486 = vmax.f32 %v484, %v485
      %v487 = vsel %vm304, %v252, -inf
      %v488 = vrot.slane %v487, 4
      %v489 = vmax.f32 %v487, %v488
      %v490 = vrot.slane %v489, 2
      %v491 = vmax.f32 %v489, %v490
      %v492 = vrot.slane %v491, 1
      %v493 = vmax.f32 %v491, %v492
      %v494 = vsel %vm304, %v254, -inf
      %v495 = vrot.slane %v494, 4
      %v496 = vmax.f32 %v494, %v495
      %v497 = vrot.slane %v496, 2
      %v498 = vmax.f32 %v496, %v497
      %v499 = vrot.slane %v498, 1
      %v500 = vmax.f32 %v498, %v499
      %v501 = vsel %vm304, %v262, -inf
      %v502 = vrot.slane %v501, 4
      %v503 = vmax.f32 %v501, %v502
      %v504 = vrot.slane %v503, 2
      %v505 = vmax.f32 %v503, %v504
      %v506 = vrot.slane %v505, 1
      %v507 = vmax.f32 %v505, %v506
      %v508 = vsel %vm304, %v270, -inf
      %v509 = vrot.slane %v508, 4
      %v510 = vmax.f32 %v508, %v509
      %v511 = vrot.slane %v510, 2
      %v512 = vmax.f32 %v510, %v511
      %v513 = vrot.slane %v512, 1
      %v514 = vmax.f32 %v512, %v513
      %v515 = vsel %vm304, %v269, -inf
      %v516 = vrot.slane %v515, 4
      %v517 = vmax.f32 %v515, %v516
      %v518 = vrot.slane %v517, 2
      %v519 = vmax.f32 %v517, %v518
      %v520 = vrot.slane %v519, 1
      %v521 = vmax.f32 %v519, %v520
      %v522 = vsel %vm304, %v271, -inf
      %v523 = vrot.slane %v522, 4
      %v524 = vmax.f32 %v522, %v523
      %v525 = vrot.slane %v524, 2
      %v526 = vmax.f32 %v524, %v525
      %v527 = vrot.slane %v526, 1
      %v528 = vmax.f32 %v526, %v527
      %561 = vrot.lane.b32.xlu0 %v311, 126
      %v562 = vpop.permute.xlu0 %561
      %563 = vrot.lane.b32.xlu0 %v318, 126
      %v564 = vpop.permute.xlu0 %563
      %565 = vrot.lane.b32.xlu0 %v325, 126
      %v566 = vpop.permute.xlu0 %565
      %567 = vrot.lane.b32.xlu0 %v332, 126
      %v568 = vpop.permute.xlu0 %567
      %569 = vrot.lane.b32.xlu0 %v339, 126
      %v570 = vpop.permute.xlu0 %569
      %571 = vrot.lane.b32.xlu0 %v346, 126
      %v572 = vpop.permute.xlu0 %571
      %573 = vrot.lane.b32.xlu0 %v353, 126
      %v574 = vpop.permute.xlu0 %573
      %575 = vrot.lane.b32.xlu0 %v360, 126
      %v576 = vpop.permute.xlu0 %575
      %577 = vrot.lane.b32.xlu0 %v367, 126
      %v578 = vpop.permute.xlu0 %577
      %579 = vrot.lane.b32.xlu0 %v374, 126
      %v580 = vpop.permute.xlu0 %579
      %581 = vrot.lane.b32.xlu0 %v381, 126
      %v582 = vpop.permute.xlu0 %581
      %583 = vrot.lane.b32.xlu0 %v388, 126
      %v584 = vpop.permute.xlu0 %583
      %585 = vrot.lane.b32.xlu0 %v395, 126
      %v586 = vpop.permute.xlu0 %585
      %587 = vrot.lane.b32.xlu0 %v402, 126
      %v588 = vpop.permute.xlu0 %587
      %589 = vrot.lane.b32.xlu0 %v409, 126
      %v590 = vpop.permute.xlu0 %589
      %591 = vrot.lane.b32.xlu0 %v416, 126
      %v592 = vpop.permute.xlu0 %591
      %593 = vrot.lane.b32.xlu0 %v423, 126
      %v594 = vpop.permute.xlu0 %593
      %595 = vrot.lane.b32.xlu0 %v430, 126
      %v596 = vpop.permute.xlu0 %595
      %597 = vrot.lane.b32.xlu0 %v437, 126
      %v598 = vpop.permute.xlu0 %597
      %599 = vrot.lane.b32.xlu0 %v444, 126
      %v600 = vpop.permute.xlu0 %599
      %601 = vrot.lane.b32.xlu0 %v451, 126
      %v602 = vpop.permute.xlu0 %601
      %603 = vrot.lane.b32.xlu0 %v458, 126
      %v604 = vpop.permute.xlu0 %603
      %605 = vrot.lane.b32.xlu0 %v465, 126
      %v606 = vpop.permute.xlu0 %605
      %607 = vrot.lane.b32.xlu0 %v472, 126
      %v608 = vpop.permute.xlu0 %607
      %609 = vrot.lane.b32.xlu0 %v479, 126
      %v610 = vpop.permute.xlu0 %609
      %611 = vrot.lane.b32.xlu0 %v486, 126
      %v612 = vpop.permute.xlu0 %611
      %613 = vrot.lane.b32.xlu0 %v493, 126
      %v614 = vpop.permute.xlu0 %613
      %615 = vrot.lane.b32.xlu0 %v500, 126
      %v616 = vpop.permute.xlu0 %615
      %617 = vrot.lane.b32.xlu0 %v507, 126
      %v618 = vpop.permute.xlu0 %617
      %619 = vrot.lane.b32.xlu0 %v514, 126
      %v620 = vpop.permute.xlu0 %619
      %621 = vrot.lane.b32.xlu0 %v521, 126
      %v622 = vpop.permute.xlu0 %621
      %623 = vrot.lane.b32.xlu0 %v528, 126
      %v624 = vpop.permute.xlu0 %623
      %625 = vrot.lane.b32.xlu0 %v311, 124
      %v626 = vpop.permute.xlu0 %625
      %627 = vrot.lane.b32.xlu0 %v318, 124
      %v628 = vpop.permute.xlu0 %627
      %629 = vrot.lane.b32.xlu0 %v325, 124
      %v630 = vpop.permute.xlu0 %629
      %631 = vrot.lane.b32.xlu0 %v332, 124
      %v632 = vpop.permute.xlu0 %631
      %633 = vrot.lane.b32.xlu0 %v339, 124
      %v634 = vpop.permute.xlu0 %633
      %635 = vrot.lane.b32.xlu0 %v346, 124
      %v636 = vpop.permute.xlu0 %635
      %637 = vrot.lane.b32.xlu0 %v353, 124
      %v638 = vpop.permute.xlu0 %637
      %639 = vrot.lane.b32.xlu0 %v360, 124
      %v640 = vpop.permute.xlu0 %639
      %641 = vrot.lane.b32.xlu0 %v367, 124
      %v642 = vpop.permute.xlu0 %641
      %643 = vrot.lane.b32.xlu0 %v374, 124
      %v644 = vpop.permute.xlu0 %643
      %645 = vrot.lane.b32.xlu0 %v381, 124
      %v646 = vpop.permute.xlu0 %645
      %647 = vrot.lane.b32.xlu0 %v388, 124
      %v648 = vpop.permute.xlu0 %647
      %649 = vrot.lane.b32.xlu0 %v395, 124
      %v650 = vpop.permute.xlu0 %649
      %651 = vrot.lane.b32.xlu0 %v402, 124
      %v652 = vpop.permute.xlu0 %651
      %653 = vrot.lane.b32.xlu0 %v409, 124
      %v654 = vpop.permute.xlu0 %653
      %655 = vrot.lane.b32.xlu0 %v416, 124
      %v656 = vpop.permute.xlu0 %655
      %657 = vrot.lane.b32.xlu0 %v423, 124
      %v658 = vpop.permute.xlu0 %657
      %659 = vrot.lane.b32.xlu0 %v430, 124
      %v660 = vpop.permute.xlu0 %659
      %661 = vrot.lane.b32.xlu0 %v437, 124
      %v662 = vpop.permute.xlu0 %661
      %663 = vrot.lane.b32.xlu0 %v444, 124
      %v664 = vpop.permute.xlu0 %663
      %665 = vrot.lane.b32.xlu0 %v451, 124
      %v666 = vpop.permute.xlu0 %665
      %667 = vrot.lane.b32.xlu0 %v458, 124
      %v668 = vpop.permute.xlu0 %667
      %669 = vrot.lane.b32.xlu0 %v465, 124
      %v670 = vpop.permute.xlu0 %669
      %671 = vrot.lane.b32.xlu0 %v472, 124
      %v672 = vpop.permute.xlu0 %671
      %673 = vrot.lane.b32.xlu0 %v479, 124
      %v674 = vpop.permute.xlu0 %673
      %675 = vrot.lane.b32.xlu0 %v486, 124
      %v676 = vpop.permute.xlu0 %675
      %677 = vrot.lane.b32.xlu0 %v493, 124
      %v678 = vpop.permute.xlu0 %677
      %679 = vrot.lane.b32.xlu0 %v500, 124
      %v680 = vpop.permute.xlu0 %679
      %681 = vrot.lane.b32.xlu0 %v507, 124
      %v682 = vpop.permute.xlu0 %681
      %683 = vrot.lane.b32.xlu0 %v514, 124
      %v684 = vpop.permute.xlu0 %683
      %685 = vrot.lane.b32.xlu0 %v521, 124
      %v686 = vpop.permute.xlu0 %685
      %687 = vrot.lane.b32.xlu0 %v528, 124
      %v688 = vpop.permute.xlu0 %687
      %689 = vrot.lane.b32.xlu0 %v311, 122
      %v690 = vpop.permute.xlu0 %689
      %691 = vrot.lane.b32.xlu0 %v318, 122
      %v692 = vpop.permute.xlu0 %691
      %693 = vrot.lane.b32.xlu0 %v325, 122
      %v694 = vpop.permute.xlu0 %693
      %695 = vrot.lane.b32.xlu0 %v332, 122
      %v696 = vpop.permute.xlu0 %695
      %697 = vrot.lane.b32.xlu0 %v339, 122
      %v698 = vpop.permute.xlu0 %697
      %699 = vrot.lane.b32.xlu0 %v346, 122
      %v700 = vpop.permute.xlu0 %699
      %701 = vrot.lane.b32.xlu0 %v353, 122
      %v702 = vpop.permute.xlu0 %701
      %703 = vrot.lane.b32.xlu0 %v360, 122
      %v704 = vpop.permute.xlu0 %703
      %705 = vrot.lane.b32.xlu0 %v367, 122
      %v706 = vpop.permute.xlu0 %705
      %707 = vrot.lane.b32.xlu0 %v374, 122
      %v708 = vpop.permute.xlu0 %707
      %709 = vrot.lane.b32.xlu0 %v381, 122
      %v710 = vpop.permute.xlu0 %709
      %711 = vrot.lane.b32.xlu0 %v388, 122
      %v712 = vpop.permute.xlu0 %711
      %713 = vrot.lane.b32.xlu0 %v395, 122
      %v714 = vpop.permute.xlu0 %713
      %715 = vrot.lane.b32.xlu0 %v402, 122
      %v716 = vpop.permute.xlu0 %715
      %717 = vrot.lane.b32.xlu0 %v409, 122
      %v718 = vpop.permute.xlu0 %717
      %719 = vrot.lane.b32.xlu0 %v416, 122
      %v720 = vpop.permute.xlu0 %719
      %721 = vrot.lane.b32.xlu0 %v423, 122
      %v722 = vpop.permute.xlu0 %721
      %723 = vrot.lane.b32.xlu0 %v430, 122
      %v724 = vpop.permute.xlu0 %723
      %725 = vrot.lane.b32.xlu0 %v437, 122
      %v726 = vpop.permute.xlu0 %725
      %727 = vrot.lane.b32.xlu0 %v444, 122
      %v728 = vpop.permute.xlu0 %727
      %729 = vrot.lane.b32.xlu0 %v451, 122
      %v730 = vpop.permute.xlu0 %729
      %731 = vrot.lane.b32.xlu0 %v458, 122
      %v732 = vpop.permute.xlu0 %731
      %733 = vrot.lane.b32.xlu0 %v465, 122
      %v734 = vpop.permute.xlu0 %733
      %735 = vrot.lane.b32.xlu0 %v472, 122
      %v736 = vpop.permute.xlu0 %735
      %737 = vrot.lane.b32.xlu0 %v479, 122
      %v738 = vpop.permute.xlu0 %737
      %739 = vrot.lane.b32.xlu0 %v486, 122
      %v740 = vpop.permute.xlu0 %739
      %741 = vrot.lane.b32.xlu0 %v493, 122
      %v742 = vpop.permute.xlu0 %741
      %743 = vrot.lane.b32.xlu0 %v500, 122
      %v744 = vpop.permute.xlu0 %743
      %745 = vrot.lane.b32.xlu0 %v507, 122
      %v746 = vpop.permute.xlu0 %745
      %747 = vrot.lane.b32.xlu0 %v514, 122
      %v748 = vpop.permute.xlu0 %747
      %749 = vrot.lane.b32.xlu0 %v521, 122
      %v750 = vpop.permute.xlu0 %749
      %751 = vrot.lane.b32.xlu0 %v528, 122
      %v752 = vpop.permute.xlu0 %751
      %753 = vrot.lane.b32.xlu0 %v311, 120
      %v754 = vpop.permute.xlu0 %753
      %755 = vrot.lane.b32.xlu0 %v318, 120
      %v756 = vpop.permute.xlu0 %755
      %757 = vrot.lane.b32.xlu0 %v325, 120
      %v758 = vpop.permute.xlu0 %757
      %759 = vrot.lane.b32.xlu0 %v332, 120
      %v760 = vpop.permute.xlu0 %759
      %761 = vrot.lane.b32.xlu0 %v339, 120
      %v762 = vpop.permute.xlu0 %761
      %763 = vrot.lane.b32.xlu0 %v346, 120
      %v764 = vpop.permute.xlu0 %763
      %765 = vrot.lane.b32.xlu0 %v353, 120
      %v766 = vpop.permute.xlu0 %765
      %767 = vrot.lane.b32.xlu0 %v360, 120
      %v768 = vpop.permute.xlu0 %767
      %769 = vrot.lane.b32.xlu0 %v367, 120
      %v770 = vpop.permute.xlu0 %769
      %771 = vrot.lane.b32.xlu0 %v374, 120
      %v772 = vpop.permute.xlu0 %771
      %773 = vrot.lane.b32.xlu0 %v381, 120
      %v774 = vpop.permute.xlu0 %773
      %775 = vrot.lane.b32.xlu0 %v388, 120
      %v776 = vpop.permute.xlu0 %775
      %777 = vrot.lane.b32.xlu0 %v395, 120
      %v778 = vpop.permute.xlu0 %777
      %779 = vrot.lane.b32.xlu0 %v402, 120
      %v780 = vpop.permute.xlu0 %779
      %781 = vrot.lane.b32.xlu0 %v409, 120
      %v782 = vpop.permute.xlu0 %781
      %783 = vrot.lane.b32.xlu0 %v416, 120
      %v784 = vpop.permute.xlu0 %783
      %785 = vrot.lane.b32.xlu0 %v423, 120
      %v786 = vpop.permute.xlu0 %785
      %787 = vrot.lane.b32.xlu0 %v430, 120
      %v788 = vpop.permute.xlu0 %787
      %789 = vrot.lane.b32.xlu0 %v437, 120
      %v790 = vpop.permute.xlu0 %789
      %791 = vrot.lane.b32.xlu0 %v444, 120
      %v792 = vpop.permute.xlu0 %791
      %793 = vrot.lane.b32.xlu0 %v451, 120
      %v794 = vpop.permute.xlu0 %793
      %795 = vrot.lane.b32.xlu0 %v458, 120
      %v796 = vpop.permute.xlu0 %795
      %797 = vrot.lane.b32.xlu0 %v465, 120
      %v798 = vpop.permute.xlu0 %797
      %799 = vrot.lane.b32.xlu0 %v472, 120
      %v800 = vpop.permute.xlu0 %799
      %801 = vrot.lane.b32.xlu0 %v479, 120
      %v802 = vpop.permute.xlu0 %801
      %803 = vrot.lane.b32.xlu0 %v486, 120
      %v804 = vpop.permute.xlu0 %803
      %805 = vrot.lane.b32.xlu0 %v493, 120
      %v806 = vpop.permute.xlu0 %805
      %807 = vrot.lane.b32.xlu0 %v500, 120
      %v808 = vpop.permute.xlu0 %807
      %809 = vrot.lane.b32.xlu0 %v507, 120
      %v810 = vpop.permute.xlu0 %809
      %811 = vrot.lane.b32.xlu0 %v514, 120
      %v812 = vpop.permute.xlu0 %811
      %813 = vrot.lane.b32.xlu0 %v521, 120
      %v814 = vpop.permute.xlu0 %813
      %815 = vrot.lane.b32.xlu0 %v528, 120
      %v816 = vpop.permute.xlu0 %815
      %817 = vrot.lane.b32.xlu0 %v311, 118
      %v818 = vpop.permute.xlu0 %817
      %819 = vrot.lane.b32.xlu0 %v318, 118
      %v820 = vpop.permute.xlu0 %819
      %821 = vrot.lane.b32.xlu0 %v325, 118
      %v822 = vpop.permute.xlu0 %821
      %823 = vrot.lane.b32.xlu0 %v332, 118
      %v824 = vpop.permute.xlu0 %823
      %825 = vrot.lane.b32.xlu0 %v339, 118
      %v826 = vpop.permute.xlu0 %825
      %827 = vrot.lane.b32.xlu0 %v346, 118
      %v828 = vpop.permute.xlu0 %827
      %829 = vrot.lane.b32.xlu0 %v353, 118
      %v830 = vpop.permute.xlu0 %829
      %831 = vrot.lane.b32.xlu0 %v360, 118
      %v832 = vpop.permute.xlu0 %831
      %833 = vrot.lane.b32.xlu0 %v367, 118
      %v834 = vpop.permute.xlu0 %833
      %835 = vrot.lane.b32.xlu0 %v374, 118
      %v836 = vpop.permute.xlu0 %835
      %837 = vrot.lane.b32.xlu0 %v381, 118
      %v838 = vpop.permute.xlu0 %837
      %839 = vrot.lane.b32.xlu0 %v388, 118
      %v840 = vpop.permute.xlu0 %839
      %841 = vrot.lane.b32.xlu0 %v395, 118
      %v842 = vpop.permute.xlu0 %841
      %843 = vrot.lane.b32.xlu0 %v402, 118
      %v844 = vpop.permute.xlu0 %843
      %845 = vrot.lane.b32.xlu0 %v409, 118
      %v846 = vpop.permute.xlu0 %845
      %847 = vrot.lane.b32.xlu0 %v416, 118
      %v848 = vpop.permute.xlu0 %847
      %849 = vrot.lane.b32.xlu0 %v423, 118
      %v850 = vpop.permute.xlu0 %849
      %851 = vrot.lane.b32.xlu0 %v430, 118
      %v852 = vpop.permute.xlu0 %851
      %853 = vrot.lane.b32.xlu0 %v437, 118
      %v854 = vpop.permute.xlu0 %853
      %855 = vrot.lane.b32.xlu0 %v444, 118
      %v856 = vpop.permute.xlu0 %855
      %857 = vrot.lane.b32.xlu0 %v451, 118
      %v858 = vpop.permute.xlu0 %857
      %859 = vrot.lane.b32.xlu0 %v458, 118
      %v860 = vpop.permute.xlu0 %859
      %861 = vrot.lane.b32.xlu0 %v465, 118
      %v862 = vpop.permute.xlu0 %861
      %863 = vrot.lane.b32.xlu0 %v472, 118
      %v864 = vpop.permute.xlu0 %863
      %865 = vrot.lane.b32.xlu0 %v479, 118
      %v866 = vpop.permute.xlu0 %865
      %867 = vrot.lane.b32.xlu0 %v486, 118
      %v868 = vpop.permute.xlu0 %867
      %869 = vrot.lane.b32.xlu0 %v493, 118
      %v870 = vpop.permute.xlu0 %869
      %871 = vrot.lane.b32.xlu0 %v500, 118
      %v872 = vpop.permute.xlu0 %871
      %873 = vrot.lane.b32.xlu0 %v507, 118
      %v874 = vpop.permute.xlu0 %873
      %875 = vrot.lane.b32.xlu0 %v514, 118
      %v876 = vpop.permute.xlu0 %875
      %877 = vrot.lane.b32.xlu0 %v521, 118
      %v878 = vpop.permute.xlu0 %877
      %879 = vrot.lane.b32.xlu0 %v528, 118
      %v880 = vpop.permute.xlu0 %879
      %881 = vrot.lane.b32.xlu0 %v311, 116
      %v882 = vpop.permute.xlu0 %881
      %883 = vrot.lane.b32.xlu0 %v318, 116
      %v884 = vpop.permute.xlu0 %883
      %885 = vrot.lane.b32.xlu0 %v325, 116
      %v886 = vpop.permute.xlu0 %885
      %887 = vrot.lane.b32.xlu0 %v332, 116
      %v888 = vpop.permute.xlu0 %887
      %889 = vrot.lane.b32.xlu0 %v339, 116
      %v890 = vpop.permute.xlu0 %889
      %891 = vrot.lane.b32.xlu0 %v346, 116
      %v892 = vpop.permute.xlu0 %891
      %893 = vrot.lane.b32.xlu0 %v353, 116
      %v894 = vpop.permute.xlu0 %893
      %895 = vrot.lane.b32.xlu0 %v360, 116
      %v896 = vpop.permute.xlu0 %895
      %897 = vrot.lane.b32.xlu0 %v367, 116
      %v898 = vpop.permute.xlu0 %897
      %899 = vrot.lane.b32.xlu0 %v374, 116
      %v900 = vpop.permute.xlu0 %899
      %901 = vrot.lane.b32.xlu0 %v381, 116
      %v902 = vpop.permute.xlu0 %901
      %903 = vrot.lane.b32.xlu0 %v388, 116
      %v904 = vpop.permute.xlu0 %903
      %905 = vrot.lane.b32.xlu0 %v395, 116
      %v906 = vpop.permute.xlu0 %905
      %907 = vrot.lane.b32.xlu0 %v402, 116
      %v908 = vpop.permute.xlu0 %907
      %909 = vrot.lane.b32.xlu0 %v409, 116
      %v910 = vpop.permute.xlu0 %909
      %911 = vrot.lane.b32.xlu0 %v416, 116
      %v912 = vpop.permute.xlu0 %911
      %913 = vrot.lane.b32.xlu0 %v423, 116
      %v914 = vpop.permute.xlu0 %913
      %915 = vrot.lane.b32.xlu0 %v430, 116
      %v916 = vpop.permute.xlu0 %915
      %917 = vrot.lane.b32.xlu0 %v437, 116
      %v918 = vpop.permute.xlu0 %917
      %919 = vrot.lane.b32.xlu0 %v444, 116
      %v920 = vpop.permute.xlu0 %919
      %921 = vrot.lane.b32.xlu0 %v451, 116
      %v922 = vpop.permute.xlu0 %921
      %923 = vrot.lane.b32.xlu0 %v458, 116
      %v924 = vpop.permute.xlu0 %923
      %925 = vrot.lane.b32.xlu0 %v465, 116
      %v926 = vpop.permute.xlu0 %925
      %927 = vrot.lane.b32.xlu0 %v472, 116
      %v928 = vpop.permute.xlu0 %927
      %929 = vrot.lane.b32.xlu0 %v479, 116
      %v930 = vpop.permute.xlu0 %929
      %931 = vrot.lane.b32.xlu0 %v486, 116
      %v932 = vpop.permute.xlu0 %931
      %933 = vrot.lane.b32.xlu0 %v493, 116
      %v934 = vpop.permute.xlu0 %933
      %935 = vrot.lane.b32.xlu0 %v500, 116
      %v936 = vpop.permute.xlu0 %935
      %937 = vrot.lane.b32.xlu0 %v507, 116
      %v938 = vpop.permute.xlu0 %937
      %939 = vrot.lane.b32.xlu0 %v514, 116
      %v940 = vpop.permute.xlu0 %939
      %941 = vrot.lane.b32.xlu0 %v521, 116
      %v942 = vpop.permute.xlu0 %941
      %943 = vrot.lane.b32.xlu0 %v528, 116
      %v944 = vpop.permute.xlu0 %943
      %945 = vrot.lane.b32.xlu0 %v311, 114
      %v946 = vpop.permute.xlu0 %945
      %947 = vrot.lane.b32.xlu0 %v318, 114
      %v948 = vpop.permute.xlu0 %947
      %949 = vrot.lane.b32.xlu0 %v325, 114
      %v950 = vpop.permute.xlu0 %949
      %951 = vrot.lane.b32.xlu0 %v332, 114
      %v952 = vpop.permute.xlu0 %951
      %953 = vrot.lane.b32.xlu0 %v339, 114
      %v954 = vpop.permute.xlu0 %953
      %955 = vrot.lane.b32.xlu0 %v346, 114
      %v956 = vpop.permute.xlu0 %955
      %957 = vrot.lane.b32.xlu0 %v353, 114
      %v958 = vpop.permute.xlu0 %957
      %959 = vrot.lane.b32.xlu0 %v360, 114
      %v960 = vpop.permute.xlu0 %959
      %961 = vrot.lane.b32.xlu0 %v367, 114
      %v962 = vpop.permute.xlu0 %961
      %963 = vrot.lane.b32.xlu0 %v374, 114
      %v964 = vpop.permute.xlu0 %963
      %965 = vrot.lane.b32.xlu0 %v381, 114
      %v966 = vpop.permute.xlu0 %965
      %967 = vrot.lane.b32.xlu0 %v388, 114
      %v968 = vpop.permute.xlu0 %967
      %969 = vrot.lane.b32.xlu0 %v395, 114
      %v970 = vpop.permute.xlu0 %969
      %971 = vrot.lane.b32.xlu0 %v402, 114
      %v972 = vpop.permute.xlu0 %971
      %973 = vrot.lane.b32.xlu0 %v409, 114
      %v974 = vpop.permute.xlu0 %973
      %975 = vrot.lane.b32.xlu0 %v416, 114
      %v976 = vpop.permute.xlu0 %975
      %977 = vrot.lane.b32.xlu0 %v423, 114
      %v978 = vpop.permute.xlu0 %977
      %979 = vrot.lane.b32.xlu0 %v430, 114
      %v980 = vpop.permute.xlu0 %979
      %981 = vrot.lane.b32.xlu0 %v437, 114
      %v982 = vpop.permute.xlu0 %981
      %983 = vrot.lane.b32.xlu0 %v444, 114
      %v984 = vpop.permute.xlu0 %983
      %985 = vrot.lane.b32.xlu0 %v451, 114
      %v986 = vpop.permute.xlu0 %985
      %987 = vrot.lane.b32.xlu0 %v458, 114
      %v988 = vpop.permute.xlu0 %987
      %989 = vrot.lane.b32.xlu0 %v465, 114
      %v990 = vpop.permute.xlu0 %989
      %991 = vrot.lane.b32.xlu0 %v472, 114
      %v992 = vpop.permute.xlu0 %991
      %993 = vrot.lane.b32.xlu0 %v479, 114
      %v994 = vpop.permute.xlu0 %993
      %995 = vrot.lane.b32.xlu0 %v486, 114
      %v996 = vpop.permute.xlu0 %995
      %997 = vrot.lane.b32.xlu0 %v493, 114
      %v998 = vpop.permute.xlu0 %997
      %999 = vrot.lane.b32.xlu0 %v500, 114
      %v1000 = vpop.permute.xlu0 %999
      %1001 = vrot.lane.b32.xlu0 %v507, 114
      %v1002 = vpop.permute.xlu0 %1001
      %1003 = vrot.lane.b32.xlu0 %v514, 114
      %v1004 = vpop.permute.xlu0 %1003
      %1005 = vrot.lane.b32.xlu0 %v521, 114
      %v1006 = vpop.permute.xlu0 %1005
      %1007 = vrot.lane.b32.xlu0 %v528, 114
      %v1008 = vpop.permute.xlu0 %1007
      %v1009 = vrot.slane %v318, 7
      %vm1010 = vcmask 1041409
      %v1011 = vsel %vm1010, %v1009, %v311
      %v1012 = vrot.slane %v325, 6
      %vm1013 = vcmask 1042434
      %v1014 = vsel %vm1013, %v1012, %v1011
      %v1015 = vrot.slane %v332, 5
      %vm1016 = vcmask 1043459
      %v1017 = vsel %vm1016, %v1015, %v1014
      %v1018 = vrot.slane %v339, 4
      %vm1019 = vcmask 1044484
      %v1020 = vsel %vm1019, %v1018, %v1017
      %v1021 = vrot.slane %v346, 3
      %vm1022 = vcmask 1045509
      %v1023 = vsel %vm1022, %v1021, %v1020
      %v1024 = vrot.slane %v353, 2
      %vm1025 = vcmask 1046534
      %v1026 = vsel %vm1025, %v1024, %v1023
      %v1027 = vrot.slane %v360, 1
      %vm1028 = vcmask 1047559
      %v1029 = vsel %vm1028, %v1027, %v1026
      %v1030 = vrot.slane %v374, 7
      %v1031 = vsel %vm1010, %v1030, %v367
      %v1032 = vrot.slane %v381, 6
      %v1033 = vsel %vm1013, %v1032, %v1031
      %v1034 = vrot.slane %v388, 5
      %v1035 = vsel %vm1016, %v1034, %v1033
      %v1036 = vrot.slane %v395, 4
      %v1037 = vsel %vm1019, %v1036, %v1035
      %v1038 = vrot.slane %v402, 3
      %v1039 = vsel %vm1022, %v1038, %v1037
      %v1040 = vrot.slane %v409, 2
      %v1041 = vsel %vm1025, %v1040, %v1039
      %v1042 = vrot.slane %v416, 1
      %v1043 = vsel %vm1028, %v1042, %v1041
      %v1044 = vrot.slane %v430, 7
      %v1045 = vsel %vm1010, %v1044, %v423
      %v1046 = vrot.slane %v437, 6
      %v1047 = vsel %vm1013, %v1046, %v1045
      %v1048 = vrot.slane %v444, 5
      %v1049 = vsel %vm1016, %v1048, %v1047
      %v1050 = vrot.slane %v451, 4
      %v1051 = vsel %vm1019, %v1050, %v1049
      %v1052 = vrot.slane %v458, 3
      %v1053 = vsel %vm1022, %v1052, %v1051
      %v1054 = vrot.slane %v465, 2
      %v1055 = vsel %vm1025, %v1054, %v1053
      %v1056 = vrot.slane %v472, 1
      %v1057 = vsel %vm1028, %v1056, %v1055
      %v1058 = vrot.slane %v486, 7
      %v1059 = vsel %vm1010, %v1058, %v479
      %v1060 = vrot.slane %v493, 6
      %v1061 = vsel %vm1013, %v1060, %v1059
      %v1062 = vrot.slane %v500, 5
      %v1063 = vsel %vm1016, %v1062, %v1061
      %v1064 = vrot.slane %v507, 4
      %v1065 = vsel %vm1019, %v1064, %v1063
      %v1066 = vrot.slane %v514, 3
      %v1067 = vsel %vm1022, %v1066, %v1065
      %v1068 = vrot.slane %v521, 2
      %v1069 = vsel %vm1025, %v1068, %v1067
      %v1070 = vrot.slane %v528, 1
      %v1071 = vsel %vm1028, %v1070, %v1069
      %v1072 = vrot.slane %v564, 7
      %v1073 = vsel %vm1010, %v1072, %v562
      %v1074 = vrot.slane %v566, 6
      %v1075 = vsel %vm1013, %v1074, %v1073
      %v1076 = vrot.slane %v568, 5
      %v1077 = vsel %vm1016, %v1076, %v1075
      %v1078 = vrot.slane %v570, 4
      %v1079 = vsel %vm1019, %v1078, %v1077
      %v1080 = vrot.slane %v572, 3
      %v1081 = vsel %vm1022, %v1080, %v1079
      %v1082 = vrot.slane %v574, 2
      %v1083 = vsel %vm1025, %v1082, %v1081
      %v1084 = vrot.slane %v576, 1
      %v1085 = vsel %vm1028, %v1084, %v1083
      %v1086 = vrot.slane %v580, 7
      %v1087 = vsel %vm1010, %v1086, %v578
      %v1088 = vrot.slane %v582, 6
      %v1089 = vsel %vm1013, %v1088, %v1087
      %v1090 = vrot.slane %v584, 5
      %v1091 = vsel %vm1016, %v1090, %v1089
      %v1092 = vrot.slane %v586, 4
      %v1093 = vsel %vm1019, %v1092, %v1091
      %v1094 = vrot.slane %v588, 3
      %v1095 = vsel %vm1022, %v1094, %v1093
      %v1096 = vrot.slane %v590, 2
      %v1097 = vsel %vm1025, %v1096, %v1095
      %v1098 = vrot.slane %v592, 1
      %v1099 = vsel %vm1028, %v1098, %v1097
      %v1100 = vrot.slane %v596, 7
      %v1101 = vsel %vm1010, %v1100, %v594
      %v1102 = vrot.slane %v598, 6
      %v1103 = vsel %vm1013, %v1102, %v1101
      %v1104 = vrot.slane %v600, 5
      %v1105 = vsel %vm1016, %v1104, %v1103
      %v1106 = vrot.slane %v602, 4
      %v1107 = vsel %vm1019, %v1106, %v1105
      %v1108 = vrot.slane %v604, 3
      %v1109 = vsel %vm1022, %v1108, %v1107
      %v1110 = vrot.slane %v606, 2
      %v1111 = vsel %vm1025, %v1110, %v1109
      %v1112 = vrot.slane %v608, 1
      %v1113 = vsel %vm1028, %v1112, %v1111
      %v1114 = vrot.slane %v612, 7
      %v1115 = vsel %vm1010, %v1114, %v610
      %v1116 = vrot.slane %v614, 6
      %v1117 = vsel %vm1013, %v1116, %v1115
      %v1118 = vrot.slane %v616, 5
      %v1119 = vsel %vm1016, %v1118, %v1117
      %v1120 = vrot.slane %v618, 4
      %v1121 = vsel %vm1019, %v1120, %v1119
      %v1122 = vrot.slane %v620, 3
      %v1123 = vsel %vm1022, %v1122, %v1121
      %v1124 = vrot.slane %v622, 2
      %v1125 = vsel %vm1025, %v1124, %v1123
      %v1126 = vrot.slane %v624, 1
      %v1127 = vsel %vm1028, %v1126, %v1125
      %v1128 = vrot.slane %v628, 7
      %v1129 = vsel %vm1010, %v1128, %v626
      %v1130 = vrot.slane %v630, 6
      %v1131 = vsel %vm1013, %v1130, %v1129
      %v1132 = vrot.slane %v632, 5
      %v1133 = vsel %vm1016, %v1132, %v1131
      %v1134 = vrot.slane %v634, 4
      %v1135 = vsel %vm1019, %v1134, %v1133
      %v1136 = vrot.slane %v636, 3
      %v1137 = vsel %vm1022, %v1136, %v1135
      %v1138 = vrot.slane %v638, 2
      %v1139 = vsel %vm1025, %v1138, %v1137
      %v1140 = vrot.slane %v640, 1
      %v1141 = vsel %vm1028, %v1140, %v1139
      %v1142 = vrot.slane %v644, 7
      %v1143 = vsel %vm1010, %v1142, %v642
      %v1144 = vrot.slane %v646, 6
      %v1145 = vsel %vm1013, %v1144, %v1143
      %v1146 = vrot.slane %v648, 5
      %v1147 = vsel %vm1016, %v1146, %v1145
      %v1148 = vrot.slane %v650, 4
      %v1149 = vsel %vm1019, %v1148, %v1147
      %v1150 = vrot.slane %v652, 3
      %v1151 = vsel %vm1022, %v1150, %v1149
      %v1152 = vrot.slane %v654, 2
      %v1153 = vsel %vm1025, %v1152, %v1151
      %v1154 = vrot.slane %v656, 1
      %v1155 = vsel %vm1028, %v1154, %v1153
      %v1156 = vrot.slane %v660, 7
      %v1157 = vsel %vm1010, %v1156, %v658
      %v1158 = vrot.slane %v662, 6
      %v1159 = vsel %vm1013, %v1158, %v1157
      %v1160 = vrot.slane %v664, 5
      %v1161 = vsel %vm1016, %v1160, %v1159
      %v1162 = vrot.slane %v666, 4
      %v1163 = vsel %vm1019, %v1162, %v1161
      %v1164 = vrot.slane %v668, 3
      %v1165 = vsel %vm1022, %v1164, %v1163
      %v1166 = vrot.slane %v670, 2
      %v1167 = vsel %vm1025, %v1166, %v1165
      %v1168 = vrot.slane %v672, 1
      %v1169 = vsel %vm1028, %v1168, %v1167
      %v1170 = vrot.slane %v676, 7
      %v1171 = vsel %vm1010, %v1170, %v674
      %v1172 = vrot.slane %v678, 6
      %v1173 = vsel %vm1013, %v1172, %v1171
      %v1174 = vrot.slane %v680, 5
      %v1175 = vsel %vm1016, %v1174, %v1173
      %v1176 = vrot.slane %v682, 4
      %v1177 = vsel %vm1019, %v1176, %v1175
      %v1178 = vrot.slane %v684, 3
      %v1179 = vsel %vm1022, %v1178, %v1177
      %v1180 = vrot.slane %v686, 2
      %v1181 = vsel %vm1025, %v1180, %v1179
      %v1182 = vrot.slane %v688, 1
      %v1183 = vsel %vm1028, %v1182, %v1181
      %v1184 = vrot.slane %v692, 7
      %v1185 = vsel %vm1010, %v1184, %v690
      %v1186 = vrot.slane %v694, 6
      %v1187 = vsel %vm1013, %v1186, %v1185
      %v1188 = vrot.slane %v696, 5
      %v1189 = vsel %vm1016, %v1188, %v1187
      %v1190 = vrot.slane %v698, 4
      %v1191 = vsel %vm1019, %v1190, %v1189
      %v1192 = vrot.slane %v700, 3
      %v1193 = vsel %vm1022, %v1192, %v1191
      %v1194 = vrot.slane %v702, 2
      %v1195 = vsel %vm1025, %v1194, %v1193
      %v1196 = vrot.slane %v704, 1
      %v1197 = vsel %vm1028, %v1196, %v1195
      %v1198 = vrot.slane %v708, 7
      %v1199 = vsel %vm1010, %v1198, %v706
      %v1200 = vrot.slane %v710, 6
      %v1201 = vsel %vm1013, %v1200, %v1199
      %v1202 = vrot.slane %v712, 5
      %v1203 = vsel %vm1016, %v1202, %v1201
      %v1204 = vrot.slane %v714, 4
      %v1205 = vsel %vm1019, %v1204, %v1203
      %v1206 = vrot.slane %v716, 3
      %v1207 = vsel %vm1022, %v1206, %v1205
      %v1208 = vrot.slane %v718, 2
      %v1209 = vsel %vm1025, %v1208, %v1207
      %v1210 = vrot.slane %v720, 1
      %v1211 = vsel %vm1028, %v1210, %v1209
      %v1212 = vrot.slane %v724, 7
      %v1213 = vsel %vm1010, %v1212, %v722
      %v1214 = vrot.slane %v726, 6
      %v1215 = vsel %vm1013, %v1214, %v1213
      %v1216 = vrot.slane %v728, 5
      %v1217 = vsel %vm1016, %v1216, %v1215
      %v1218 = vrot.slane %v730, 4
      %v1219 = vsel %vm1019, %v1218, %v1217
      %v1220 = vrot.slane %v732, 3
      %v1221 = vsel %vm1022, %v1220, %v1219
      %v1222 = vrot.slane %v734, 2
      %v1223 = vsel %vm1025, %v1222, %v1221
      %v1224 = vrot.slane %v736, 1
      %v1225 = vsel %vm1028, %v1224, %v1223
      %v1226 = vrot.slane %v740, 7
      %v1227 = vsel %vm1010, %v1226, %v738
      %v1228 = vrot.slane %v742, 6
      %v1229 = vsel %vm1013, %v1228, %v1227
      %v1230 = vrot.slane %v744, 5
      %v1231 = vsel %vm1016, %v1230, %v1229
      %v1232 = vrot.slane %v746, 4
      %v1233 = vsel %vm1019, %v1232, %v1231
      %v1234 = vrot.slane %v748, 3
      %v1235 = vsel %vm1022, %v1234, %v1233
      %v1236 = vrot.slane %v750, 2
      %v1237 = vsel %vm1025, %v1236, %v1235
      %v1238 = vrot.slane %v752, 1
      %v1239 = vsel %vm1028, %v1238, %v1237
      %v1240 = vrot.slane %v756, 7
      %v1241 = vsel %vm1010, %v1240, %v754
      %v1242 = vrot.slane %v758, 6
      %v1243 = vsel %vm1013, %v1242, %v1241
      %v1244 = vrot.slane %v760, 5
      %v1245 = vsel %vm1016, %v1244, %v1243
      %v1246 = vrot.slane %v762, 4
      %v1247 = vsel %vm1019, %v1246, %v1245
      %v1248 = vrot.slane %v764, 3
      %v1249 = vsel %vm1022, %v1248, %v1247
      %v1250 = vrot.slane %v766, 2
      %v1251 = vsel %vm1025, %v1250, %v1249
      %v1252 = vrot.slane %v768, 1
      %v1253 = vsel %vm1028, %v1252, %v1251
      %v1254 = vrot.slane %v772, 7
      %v1255 = vsel %vm1010, %v1254, %v770
      %v1256 = vrot.slane %v774, 6
      %v1257 = vsel %vm1013, %v1256, %v1255
      %v1258 = vrot.slane %v776, 5
      %v1259 = vsel %vm1016, %v1258, %v1257
      %v1260 = vrot.slane %v778, 4
      %v1261 = vsel %vm1019, %v1260, %v1259
      %v1262 = vrot.slane %v780, 3
      %v1263 = vsel %vm1022, %v1262, %v1261
      %v1264 = vrot.slane %v782, 2
      %v1265 = vsel %vm1025, %v1264, %v1263
      %v1266 = vrot.slane %v784, 1
      %v1267 = vsel %vm1028, %v1266, %v1265
      %v1268 = vrot.slane %v788, 7
      %v1269 = vsel %vm1010, %v1268, %v786
      %v1270 = vrot.slane %v790, 6
      %v1271 = vsel %vm1013, %v1270, %v1269
      %v1272 = vrot.slane %v792, 5
      %v1273 = vsel %vm1016, %v1272, %v1271
      %v1274 = vrot.slane %v794, 4
      %v1275 = vsel %vm1019, %v1274, %v1273
      %v1276 = vrot.slane %v796, 3
      %v1277 = vsel %vm1022, %v1276, %v1275
      %v1278 = vrot.slane %v798, 2
      %v1279 = vsel %vm1025, %v1278, %v1277
      %v1280 = vrot.slane %v800, 1
      %v1281 = vsel %vm1028, %v1280, %v1279
      %v1282 = vrot.slane %v804, 7
      %v1283 = vsel %vm1010, %v1282, %v802
      %v1284 = vrot.slane %v806, 6
      %v1285 = vsel %vm1013, %v1284, %v1283
      %v1286 = vrot.slane %v808, 5
      %v1287 = vsel %vm1016, %v1286, %v1285
      %v1288 = vrot.slane %v810, 4
      %v1289 = vsel %vm1019, %v1288, %v1287
      %v1290 = vrot.slane %v812, 3
      %v1291 = vsel %vm1022, %v1290, %v1289
      %v1292 = vrot.slane %v814, 2
      %v1293 = vsel %vm1025, %v1292, %v1291
      %v1294 = vrot.slane %v816, 1
      %v1295 = vsel %vm1028, %v1294, %v1293
      %v1296 = vrot.slane %v820, 7
      %v1297 = vsel %vm1010, %v1296, %v818
      %v1298 = vrot.slane %v822, 6
      %v1299 = vsel %vm1013, %v1298, %v1297
      %v1300 = vrot.slane %v824, 5
      %v1301 = vsel %vm1016, %v1300, %v1299
      %v1302 = vrot.slane %v826, 4
      %v1303 = vsel %vm1019, %v1302, %v1301
      %v1304 = vrot.slane %v828, 3
      %v1305 = vsel %vm1022, %v1304, %v1303
      %v1306 = vrot.slane %v830, 2
      %v1307 = vsel %vm1025, %v1306, %v1305
      %v1308 = vrot.slane %v832, 1
      %v1309 = vsel %vm1028, %v1308, %v1307
      %v1310 = vrot.slane %v836, 7
      %v1311 = vsel %vm1010, %v1310, %v834
      %v1312 = vrot.slane %v838, 6
      %v1313 = vsel %vm1013, %v1312, %v1311
      %v1314 = vrot.slane %v840, 5
      %v1315 = vsel %vm1016, %v1314, %v1313
      %v1316 = vrot.slane %v842, 4
      %v1317 = vsel %vm1019, %v1316, %v1315
      %v1318 = vrot.slane %v844, 3
      %v1319 = vsel %vm1022, %v1318, %v1317
      %v1320 = vrot.slane %v846, 2
      %v1321 = vsel %vm1025, %v1320, %v1319
      %v1322 = vrot.slane %v848, 1
      %v1323 = vsel %vm1028, %v1322, %v1321
      %v1324 = vrot.slane %v852, 7
      %v1325 = vsel %vm1010, %v1324, %v850
      %v1326 = vrot.slane %v854, 6
      %v1327 = vsel %vm1013, %v1326, %v1325
      %v1328 = vrot.slane %v856, 5
      %v1329 = vsel %vm1016, %v1328, %v1327
      %v1330 = vrot.slane %v858, 4
      %v1331 = vsel %vm1019, %v1330, %v1329
      %v1332 = vrot.slane %v860, 3
      %v1333 = vsel %vm1022, %v1332, %v1331
      %v1334 = vrot.slane %v862, 2
      %v1335 = vsel %vm1025, %v1334, %v1333
      %v1336 = vrot.slane %v864, 1
      %v1337 = vsel %vm1028, %v1336, %v1335
      %v1338 = vrot.slane %v868, 7
      %v1339 = vsel %vm1010, %v1338, %v866
      %v1340 = vrot.slane %v870, 6
      %v1341 = vsel %vm1013, %v1340, %v1339
      %v1342 = vrot.slane %v872, 5
      %v1343 = vsel %vm1016, %v1342, %v1341
      %v1344 = vrot.slane %v874, 4
      %v1345 = vsel %vm1019, %v1344, %v1343
      %v1346 = vrot.slane %v876, 3
      %v1347 = vsel %vm1022, %v1346, %v1345
      %v1348 = vrot.slane %v878, 2
      %v1349 = vsel %vm1025, %v1348, %v1347
      %v1350 = vrot.slane %v880, 1
      %v1351 = vsel %vm1028, %v1350, %v1349
      %v1352 = vrot.slane %v884, 7
      %v1353 = vsel %vm1010, %v1352, %v882
      %v1354 = vrot.slane %v886, 6
      %v1355 = vsel %vm1013, %v1354, %v1353
      %v1356 = vrot.slane %v888, 5
      %v1357 = vsel %vm1016, %v1356, %v1355
      %v1358 = vrot.slane %v890, 4
      %v1359 = vsel %vm1019, %v1358, %v1357
      %v1360 = vrot.slane %v892, 3
      %v1361 = vsel %vm1022, %v1360, %v1359
      %v1362 = vrot.slane %v894, 2
      %v1363 = vsel %vm1025, %v1362, %v1361
      %v1364 = vrot.slane %v896, 1
      %v1365 = vsel %vm1028, %v1364, %v1363
      %v1366 = vrot.slane %v900, 7
      %v1367 = vsel %vm1010, %v1366, %v898
      %v1368 = vrot.slane %v902, 6
      %v1369 = vsel %vm1013, %v1368, %v1367
      %v1370 = vrot.slane %v904, 5
      %v1371 = vsel %vm1016, %v1370, %v1369
      %v1372 = vrot.slane %v906, 4
      %v1373 = vsel %vm1019, %v1372, %v1371
      %v1374 = vrot.slane %v908, 3
      %v1375 = vsel %vm1022, %v1374, %v1373
      %v1376 = vrot.slane %v910, 2
      %v1377 = vsel %vm1025, %v1376, %v1375
      %v1378 = vrot.slane %v912, 1
      %v1379 = vsel %vm1028, %v1378, %v1377
      %v1380 = vrot.slane %v916, 7
      %v1381 = vsel %vm1010, %v1380, %v914
      %v1382 = vrot.slane %v918, 6
      %v1383 = vsel %vm1013, %v1382, %v1381
      %v1384 = vrot.slane %v920, 5
      %v1385 = vsel %vm1016, %v1384, %v1383
      %v1386 = vrot.slane %v922, 4
      %v1387 = vsel %vm1019, %v1386, %v1385
      %v1388 = vrot.slane %v924, 3
      %v1389 = vsel %vm1022, %v1388, %v1387
      %v1390 = vrot.slane %v926, 2
      %v1391 = vsel %vm1025, %v1390, %v1389
      %v1392 = vrot.slane %v928, 1
      %v1393 = vsel %vm1028, %v1392, %v1391
      %v1394 = vrot.slane %v932, 7
      %v1395 = vsel %vm1010, %v1394, %v930
      %v1396 = vrot.slane %v934, 6
      %v1397 = vsel %vm1013, %v1396, %v1395
      %v1398 = vrot.slane %v936, 5
      %v1399 = vsel %vm1016, %v1398, %v1397
      %v1400 = vrot.slane %v938, 4
      %v1401 = vsel %vm1019, %v1400, %v1399
      %v1402 = vrot.slane %v940, 3
      %v1403 = vsel %vm1022, %v1402, %v1401
      %v1404 = vrot.slane %v942, 2
      %v1405 = vsel %vm1025, %v1404, %v1403
      %v1406 = vrot.slane %v944, 1
      %v1407 = vsel %vm1028, %v1406, %v1405
      %v1408 = vrot.slane %v948, 7
      %v1409 = vsel %vm1010, %v1408, %v946
      %v1410 = vrot.slane %v950, 6
      %v1411 = vsel %vm1013, %v1410, %v1409
      %v1412 = vrot.slane %v952, 5
      %v1413 = vsel %vm1016, %v1412, %v1411
      %v1414 = vrot.slane %v954, 4
      %v1415 = vsel %vm1019, %v1414, %v1413
      %v1416 = vrot.slane %v956, 3
      %v1417 = vsel %vm1022, %v1416, %v1415
      %v1418 = vrot.slane %v958, 2
      %v1419 = vsel %vm1025, %v1418, %v1417
      %v1420 = vrot.slane %v960, 1
      %v1421 = vsel %vm1028, %v1420, %v1419
      %v1422 = vrot.slane %v964, 7
      %v1423 = vsel %vm1010, %v1422, %v962
      %v1424 = vrot.slane %v966, 6
      %v1425 = vsel %vm1013, %v1424, %v1423
      %v1426 = vrot.slane %v968, 5
      %v1427 = vsel %vm1016, %v1426, %v1425
      %v1428 = vrot.slane %v970, 4
      %v1429 = vsel %vm1019, %v1428, %v1427
      %v1430 = vrot.slane %v972, 3
      %v1431 = vsel %vm1022, %v1430, %v1429
      %v1432 = vrot.slane %v974, 2
      %v1433 = vsel %vm1025, %v1432, %v1431
      %v1434 = vrot.slane %v976, 1
      %v1435 = vsel %vm1028, %v1434, %v1433
      %v1436 = vrot.slane %v980, 7
      %v1437 = vsel %vm1010, %v1436, %v978
      %v1438 = vrot.slane %v982, 6
      %v1439 = vsel %vm1013, %v1438, %v1437
      %v1440 = vrot.slane %v984, 5
      %v1441 = vsel %vm1016, %v1440, %v1439
      %v1442 = vrot.slane %v986, 4
      %v1443 = vsel %vm1019, %v1442, %v1441
      %v1444 = vrot.slane %v988, 3
      %v1445 = vsel %vm1022, %v1444, %v1443
      %v1446 = vrot.slane %v990, 2
      %v1447 = vsel %vm1025, %v1446, %v1445
      %v1448 = vrot.slane %v992, 1
      %v1449 = vsel %vm1028, %v1448, %v1447
      %v1450 = vrot.slane %v996, 7
      %v1451 = vsel %vm1010, %v1450, %v994
      %v1452 = vrot.slane %v998, 6
      %v1453 = vsel %vm1013, %v1452, %v1451
      %v1454 = vrot.slane %v1000, 5
      %v1455 = vsel %vm1016, %v1454, %v1453
      %v1456 = vrot.slane %v1002, 4
      %v1457 = vsel %vm1019, %v1456, %v1455
      %v1458 = vrot.slane %v1004, 3
      %v1459 = vsel %vm1022, %v1458, %v1457
      %v1460 = vrot.slane %v1006, 2
      %v1461 = vsel %vm1025, %v1460, %v1459
      %v1462 = vrot.slane %v1008, 1
      %v1463 = vsel %vm1028, %v1462, %v1461
      %v1496 = vcombine.low %v1029, %v1141
      %v1497 = vcombine.high %v1029, %v1141
      %v1499 = vunpack.c.l.s4 1983009808
      %v1500 = vunpack.c.0.s8 %v1499
      %v1501 = vlaneseq
      %v1502 = vshrl.u32 %v1501, 7
      %v1503 = vsub.s32 %v1500, %v1502
      %v1504 = vrot.slane %v1496, %v1503
      %v1506 = vunpack.c.l.s4 1983009808
      %v1507 = vunpack.c.0.s8 %v1506
      %v1508 = vlaneseq
      %v1509 = vshrl.u32 %v1508, 7
      %v1510 = vsub.s32 %v1507, %v1509
      %v1511 = vrot.slane %v1497, %v1510
      %v1512 = vcombine.low %v1085, %v1197
      %v1513 = vcombine.high %v1085, %v1197
      %v1515 = vunpack.c.l.s4 1983009808
      %v1516 = vunpack.c.0.s8 %v1515
      %v1517 = vlaneseq
      %v1518 = vshrl.u32 %v1517, 7
      %v1519 = vsub.s32 %v1516, %v1518
      %v1520 = vrot.slane %v1512, %v1519
      %v1522 = vunpack.c.l.s4 1983009808
      %v1523 = vunpack.c.0.s8 %v1522
      %v1524 = vlaneseq
      %v1525 = vshrl.u32 %v1524, 7
      %v1526 = vsub.s32 %v1523, %v1525
      %v1527 = vrot.slane %v1513, %v1526
      %v1528 = vcombine.low %v1253, %v1365
      %v1529 = vcombine.high %v1253, %v1365
      %v1531 = vunpack.c.l.s4 1983009808
      %v1532 = vunpack.c.0.s8 %v1531
      %v1533 = vlaneseq
      %v1534 = vshrl.u32 %v1533, 7
      %v1535 = vsub.s32 %v1532, %v1534
      %v1536 = vrot.slane %v1528, %v1535
      %v1538 = vunpack.c.l.s4 1983009808
      %v1539 = vunpack.c.0.s8 %v1538
      %v1540 = vlaneseq
      %v1541 = vshrl.u32 %v1540, 7
      %v1542 = vsub.s32 %v1539, %v1541
      %v1543 = vrot.slane %v1529, %v1542
      %v1544 = vcombine.low %v1309, %v1421
      %v1545 = vcombine.high %v1309, %v1421
      %v1547 = vunpack.c.l.s4 1983009808
      %v1548 = vunpack.c.0.s8 %v1547
      %v1549 = vlaneseq
      %v1550 = vshrl.u32 %v1549, 7
      %v1551 = vsub.s32 %v1548, %v1550
      %v1552 = vrot.slane %v1544, %v1551
      %v1554 = vunpack.c.l.s4 1983009808
      %v1555 = vunpack.c.0.s8 %v1554
      %v1556 = vlaneseq
      %v1557 = vshrl.u32 %v1556, 7
      %v1558 = vsub.s32 %v1555, %v1557
      %v1559 = vrot.slane %v1545, %v1558
      %v1560 = vcombine.low %v1504, %v1520
      %v1561 = vcombine.high %v1504, %v1520
      %v1563 = vunpack.c.l.s4 1934713408
      %v1564 = vunpack.c.0.s8 %v1563
      %v1565 = vlaneseq
      %v1566 = vshrl.u32 %v1565, 7
      %v1567 = vsub.s32 %v1564, %v1566
      %v1568 = vrot.slane %v1560, %v1567
      %v1570 = vunpack.c.l.s4 1934713408
      %v1571 = vunpack.c.0.s8 %v1570
      %v1572 = vlaneseq
      %v1573 = vshrl.u32 %v1572, 7
      %v1574 = vsub.s32 %v1571, %v1573
      %v1575 = vrot.slane %v1561, %v1574
      %v1576 = vcombine.low %v1511, %v1527
      %v1577 = vcombine.high %v1511, %v1527
      %v1579 = vunpack.c.l.s4 1934713408
      %v1580 = vunpack.c.0.s8 %v1579
      %v1581 = vlaneseq
      %v1582 = vshrl.u32 %v1581, 7
      %v1583 = vsub.s32 %v1580, %v1582
      %v1584 = vrot.slane %v1576, %v1583
      %v1586 = vunpack.c.l.s4 1934713408
      %v1587 = vunpack.c.0.s8 %v1586
      %v1588 = vlaneseq
      %v1589 = vshrl.u32 %v1588, 7
      %v1590 = vsub.s32 %v1587, %v1589
      %v1591 = vrot.slane %v1577, %v1590
      %v1592 = vcombine.low %v1536, %v1552
      %v1593 = vcombine.high %v1536, %v1552
      %v1595 = vunpack.c.l.s4 1934713408
      %v1596 = vunpack.c.0.s8 %v1595
      %v1597 = vlaneseq
      %v1598 = vshrl.u32 %v1597, 7
      %v1599 = vsub.s32 %v1596, %v1598
      %v1600 = vrot.slane %v1592, %v1599
      %v1602 = vunpack.c.l.s4 1934713408
      %v1603 = vunpack.c.0.s8 %v1602
      %v1604 = vlaneseq
      %v1605 = vshrl.u32 %v1604, 7
      %v1606 = vsub.s32 %v1603, %v1605
      %v1607 = vrot.slane %v1593, %v1606
      %v1608 = vcombine.low %v1543, %v1559
      %v1609 = vcombine.high %v1543, %v1559
      %v1611 = vunpack.c.l.s4 1934713408
      %v1612 = vunpack.c.0.s8 %v1611
      %v1613 = vlaneseq
      %v1614 = vshrl.u32 %v1613, 7
      %v1615 = vsub.s32 %v1612, %v1614
      %v1616 = vrot.slane %v1608, %v1615
      %v1618 = vunpack.c.l.s4 1934713408
      %v1619 = vunpack.c.0.s8 %v1618
      %v1620 = vlaneseq
      %v1621 = vshrl.u32 %v1620, 7
      %v1622 = vsub.s32 %v1619, %v1621
      %v1623 = vrot.slane %v1609, %v1622
      %v1624 = vcombine.low %v1568, %v1600
      %v1625 = vcombine.high %v1568, %v1600
      %v1626 = vcombine.low %v1575, %v1607
      %v1627 = vcombine.high %v1575, %v1607
      %v1628 = vcombine.low %v1584, %v1616
      %v1629 = vcombine.high %v1584, %v1616
      %v1630 = vcombine.low %v1591, %v1623
      %v1631 = vcombine.high %v1591, %v1623
      %v1632 = vcombine.low %v1043, %v1155
      %v1633 = vcombine.high %v1043, %v1155
      %v1635 = vunpack.c.l.s4 1983009808
      %v1636 = vunpack.c.0.s8 %v1635
      %v1637 = vlaneseq
      %v1638 = vshrl.u32 %v1637, 7
      %v1639 = vsub.s32 %v1636, %v1638
      %v1640 = vrot.slane %v1632, %v1639
      %v1642 = vunpack.c.l.s4 1983009808
      %v1643 = vunpack.c.0.s8 %v1642
      %v1644 = vlaneseq
      %v1645 = vshrl.u32 %v1644, 7
      %v1646 = vsub.s32 %v1643, %v1645
      %v1647 = vrot.slane %v1633, %v1646
      %v1648 = vcombine.low %v1099, %v1211
      %v1649 = vcombine.high %v1099, %v1211
      %v1651 = vunpack.c.l.s4 1983009808
      %v1652 = vunpack.c.0.s8 %v1651
      %v1653 = vlaneseq
      %v1654 = vshrl.u32 %v1653, 7
      %v1655 = vsub.s32 %v1652, %v1654
      %v1656 = vrot.slane %v1648, %v1655
      %v1658 = vunpack.c.l.s4 1983009808
      %v1659 = vunpack.c.0.s8 %v1658
      %v1660 = vlaneseq
      %v1661 = vshrl.u32 %v1660, 7
      %v1662 = vsub.s32 %v1659, %v1661
      %v1663 = vrot.slane %v1649, %v1662
      %v1664 = vcombine.low %v1267, %v1379
      %v1665 = vcombine.high %v1267, %v1379
      %v1667 = vunpack.c.l.s4 1983009808
      %v1668 = vunpack.c.0.s8 %v1667
      %v1669 = vlaneseq
      %v1670 = vshrl.u32 %v1669, 7
      %v1671 = vsub.s32 %v1668, %v1670
      %v1672 = vrot.slane %v1664, %v1671
      %v1674 = vunpack.c.l.s4 1983009808
      %v1675 = vunpack.c.0.s8 %v1674
      %v1676 = vlaneseq
      %v1677 = vshrl.u32 %v1676, 7
      %v1678 = vsub.s32 %v1675, %v1677
      %v1679 = vrot.slane %v1665, %v1678
      %v1680 = vcombine.low %v1323, %v1435
      %v1681 = vcombine.high %v1323, %v1435
      %v1683 = vunpack.c.l.s4 1983009808
      %v1684 = vunpack.c.0.s8 %v1683
      %v1685 = vlaneseq
      %v1686 = vshrl.u32 %v1685, 7
      %v1687 = vsub.s32 %v1684, %v1686
      %v1688 = vrot.slane %v1680, %v1687
      %v1690 = vunpack.c.l.s4 1983009808
      %v1691 = vunpack.c.0.s8 %v1690
      %v1692 = vlaneseq
      %v1693 = vshrl.u32 %v1692, 7
      %v1694 = vsub.s32 %v1691, %v1693
      %v1695 = vrot.slane %v1681, %v1694
      %v1696 = vcombine.low %v1640, %v1656
      %v1697 = vcombine.high %v1640, %v1656
      %v1699 = vunpack.c.l.s4 1934713408
      %v1700 = vunpack.c.0.s8 %v1699
      %v1701 = vlaneseq
      %v1702 = vshrl.u32 %v1701, 7
      %v1703 = vsub.s32 %v1700, %v1702
      %v1704 = vrot.slane %v1696, %v1703
      %v1706 = vunpack.c.l.s4 1934713408
      %v1707 = vunpack.c.0.s8 %v1706
      %v1708 = vlaneseq
      %v1709 = vshrl.u32 %v1708, 7
      %v1710 = vsub.s32 %v1707, %v1709
      %v1711 = vrot.slane %v1697, %v1710
      %v1712 = vcombine.low %v1647, %v1663
      %v1713 = vcombine.high %v1647, %v1663
      %v1715 = vunpack.c.l.s4 1934713408
      %v1716 = vunpack.c.0.s8 %v1715
      %v1717 = vlaneseq
      %v1718 = vshrl.u32 %v1717, 7
      %v1719 = vsub.s32 %v1716, %v1718
      %v1720 = vrot.slane %v1712, %v1719
      %v1722 = vunpack.c.l.s4 1934713408
      %v1723 = vunpack.c.0.s8 %v1722
      %v1724 = vlaneseq
      %v1725 = vshrl.u32 %v1724, 7
      %v1726 = vsub.s32 %v1723, %v1725
      %v1727 = vrot.slane %v1713, %v1726
      %v1728 = vcombine.low %v1672, %v1688
      %v1729 = vcombine.high %v1672, %v1688
      %v1731 = vunpack.c.l.s4 1934713408
      %v1732 = vunpack.c.0.s8 %v1731
      %v1733 = vlaneseq
      %v1734 = vshrl.u32 %v1733, 7
      %v1735 = vsub.s32 %v1732, %v1734
      %v1736 = vrot.slane %v1728, %v1735
      %v1738 = vunpack.c.l.s4 1934713408
      %v1739 = vunpack.c.0.s8 %v1738
      %v1740 = vlaneseq
      %v1741 = vshrl.u32 %v1740, 7
      %v1742 = vsub.s32 %v1739, %v1741
      %v1743 = vrot.slane %v1729, %v1742
      %v1744 = vcombine.low %v1679, %v1695
      %v1745 = vcombine.high %v1679, %v1695
      %v1747 = vunpack.c.l.s4 1934713408
      %v1748 = vunpack.c.0.s8 %v1747
      %v1749 = vlaneseq
      %v1750 = vshrl.u32 %v1749, 7
      %v1751 = vsub.s32 %v1748, %v1750
      %v1752 = vrot.slane %v1744, %v1751
      %v1754 = vunpack.c.l.s4 1934713408
      %v1755 = vunpack.c.0.s8 %v1754
      %v1756 = vlaneseq
      %v1757 = vshrl.u32 %v1756, 7
      %v1758 = vsub.s32 %v1755, %v1757
      %v1759 = vrot.slane %v1745, %v1758
      %v1760 = vcombine.low %v1704, %v1736
      %v1761 = vcombine.high %v1704, %v1736
      %v1762 = vcombine.low %v1711, %v1743
      %v1763 = vcombine.high %v1711, %v1743
      %v1764 = vcombine.low %v1720, %v1752
      %v1765 = vcombine.high %v1720, %v1752
      %v1766 = vcombine.low %v1727, %v1759
      %v1767 = vcombine.high %v1727, %v1759
      %v1768 = vcombine.low %v1057, %v1169
      %v1769 = vcombine.high %v1057, %v1169
      %v1771 = vunpack.c.l.s4 1983009808
      %v1772 = vunpack.c.0.s8 %v1771
      %v1773 = vlaneseq
      %v1774 = vshrl.u32 %v1773, 7
      %v1775 = vsub.s32 %v1772, %v1774
      %v1776 = vrot.slane %v1768, %v1775
      %v1778 = vunpack.c.l.s4 1983009808
      %v1779 = vunpack.c.0.s8 %v1778
      %v1780 = vlaneseq
      %v1781 = vshrl.u32 %v1780, 7
      %v1782 = vsub.s32 %v1779, %v1781
      %v1783 = vrot.slane %v1769, %v1782
      %v1784 = vcombine.low %v1113, %v1225
      %v1785 = vcombine.high %v1113, %v1225
      %v1787 = vunpack.c.l.s4 1983009808
      %v1788 = vunpack.c.0.s8 %v1787
      %v1789 = vlaneseq
      %v1790 = vshrl.u32 %v1789, 7
      %v1791 = vsub.s32 %v1788, %v1790
      %v1792 = vrot.slane %v1784, %v1791
      %v1794 = vunpack.c.l.s4 1983009808
      %v1795 = vunpack.c.0.s8 %v1794
      %v1796 = vlaneseq
      %v1797 = vshrl.u32 %v1796, 7
      %v1798 = vsub.s32 %v1795, %v1797
      %v1799 = vrot.slane %v1785, %v1798
      %v1800 = vcombine.low %v1281, %v1393
      %v1801 = vcombine.high %v1281, %v1393
      %v1803 = vunpack.c.l.s4 1983009808
      %v1804 = vunpack.c.0.s8 %v1803
      %v1805 = vlaneseq
      %v1806 = vshrl.u32 %v1805, 7
      %v1807 = vsub.s32 %v1804, %v1806
      %v1808 = vrot.slane %v1800, %v1807
      %v1810 = vunpack.c.l.s4 1983009808
      %v1811 = vunpack.c.0.s8 %v1810
      %v1812 = vlaneseq
      %v1813 = vshrl.u32 %v1812, 7
      %v1814 = vsub.s32 %v1811, %v1813
      %v1815 = vrot.slane %v1801, %v1814
      %v1816 = vcombine.low %v1337, %v1449
      %v1817 = vcombine.high %v1337, %v1449
      %v1819 = vunpack.c.l.s4 1983009808
      %v1820 = vunpack.c.0.s8 %v1819
      %v1821 = vlaneseq
      %v1822 = vshrl.u32 %v1821, 7
      %v1823 = vsub.s32 %v1820, %v1822
      %v1824 = vrot.slane %v1816, %v1823
      %v1826 = vunpack.c.l.s4 1983009808
      %v1827 = vunpack.c.0.s8 %v1826
      %v1828 = vlaneseq
      %v1829 = vshrl.u32 %v1828, 7
      %v1830 = vsub.s32 %v1827, %v1829
      %v1831 = vrot.slane %v1817, %v1830
      %v1832 = vcombine.low %v1776, %v1792
      %v1833 = vcombine.high %v1776, %v1792
      %v1835 = vunpack.c.l.s4 1934713408
      %v1836 = vunpack.c.0.s8 %v1835
      %v1837 = vlaneseq
      %v1838 = vshrl.u32 %v1837, 7
      %v1839 = vsub.s32 %v1836, %v1838
      %v1840 = vrot.slane %v1832, %v1839
      %v1842 = vunpack.c.l.s4 1934713408
      %v1843 = vunpack.c.0.s8 %v1842
      %v1844 = vlaneseq
      %v1845 = vshrl.u32 %v1844, 7
      %v1846 = vsub.s32 %v1843, %v1845
      %v1847 = vrot.slane %v1833, %v1846
      %v1848 = vcombine.low %v1783, %v1799
      %v1849 = vcombine.high %v1783, %v1799
      %v1851 = vunpack.c.l.s4 1934713408
      %v1852 = vunpack.c.0.s8 %v1851
      %v1853 = vlaneseq
      %v1854 = vshrl.u32 %v1853, 7
      %v1855 = vsub.s32 %v1852, %v1854
      %v1856 = vrot.slane %v1848, %v1855
      %v1858 = vunpack.c.l.s4 1934713408
      %v1859 = vunpack.c.0.s8 %v1858
      %v1860 = vlaneseq
      %v1861 = vshrl.u32 %v1860, 7
      %v1862 = vsub.s32 %v1859, %v1861
      %v1863 = vrot.slane %v1849, %v1862
      %v1864 = vcombine.low %v1808, %v1824
      %v1865 = vcombine.high %v1808, %v1824
      %v1867 = vunpack.c.l.s4 1934713408
      %v1868 = vunpack.c.0.s8 %v1867
      %v1869 = vlaneseq
      %v1870 = vshrl.u32 %v1869, 7
      %v1871 = vsub.s32 %v1868, %v1870
      %v1872 = vrot.slane %v1864, %v1871
      %v1874 = vunpack.c.l.s4 1934713408
      %v1875 = vunpack.c.0.s8 %v1874
      %v1876 = vlaneseq
      %v1877 = vshrl.u32 %v1876, 7
      %v1878 = vsub.s32 %v1875, %v1877
      %v1879 = vrot.slane %v1865, %v1878
      %v1880 = vcombine.low %v1815, %v1831
      %v1881 = vcombine.high %v1815, %v1831
      %v1883 = vunpack.c.l.s4 1934713408
      %v1884 = vunpack.c.0.s8 %v1883
      %v1885 = vlaneseq
      %v1886 = vshrl.u32 %v1885, 7
      %v1887 = vsub.s32 %v1884, %v1886
      %v1888 = vrot.slane %v1880, %v1887
      %v1890 = vunpack.c.l.s4 1934713408
      %v1891 = vunpack.c.0.s8 %v1890
      %v1892 = vlaneseq
      %v1893 = vshrl.u32 %v1892, 7
      %v1894 = vsub.s32 %v1891, %v1893
      %v1895 = vrot.slane %v1881, %v1894
      %v1896 = vcombine.low %v1840, %v1872
      %v1897 = vcombine.high %v1840, %v1872
      %v1898 = vcombine.low %v1847, %v1879
      %v1899 = vcombine.high %v1847, %v1879
      %v1900 = vcombine.low %v1856, %v1888
      %v1901 = vcombine.high %v1856, %v1888
      %v1902 = vcombine.low %v1863, %v1895
      %v1903 = vcombine.high %v1863, %v1895
      %v1904 = vcombine.low %v1071, %v1183
      %v1905 = vcombine.high %v1071, %v1183
      %v1907 = vunpack.c.l.s4 1983009808
      %v1908 = vunpack.c.0.s8 %v1907
      %v1909 = vlaneseq
      %v1910 = vshrl.u32 %v1909, 7
      %v1911 = vsub.s32 %v1908, %v1910
      %v1912 = vrot.slane %v1904, %v1911
      %v1914 = vunpack.c.l.s4 1983009808
      %v1915 = vunpack.c.0.s8 %v1914
      %v1916 = vlaneseq
      %v1917 = vshrl.u32 %v1916, 7
      %v1918 = vsub.s32 %v1915, %v1917
      %v1919 = vrot.slane %v1905, %v1918
      %v1920 = vcombine.low %v1127, %v1239
      %v1921 = vcombine.high %v1127, %v1239
      %v1923 = vunpack.c.l.s4 1983009808
      %v1924 = vunpack.c.0.s8 %v1923
      %v1925 = vlaneseq
      %v1926 = vshrl.u32 %v1925, 7
      %v1927 = vsub.s32 %v1924, %v1926
      %v1928 = vrot.slane %v1920, %v1927
      %v1930 = vunpack.c.l.s4 1983009808
      %v1931 = vunpack.c.0.s8 %v1930
      %v1932 = vlaneseq
      %v1933 = vshrl.u32 %v1932, 7
      %v1934 = vsub.s32 %v1931, %v1933
      %v1935 = vrot.slane %v1921, %v1934
      %v1936 = vcombine.low %v1295, %v1407
      %v1937 = vcombine.high %v1295, %v1407
      %v1939 = vunpack.c.l.s4 1983009808
      %v1940 = vunpack.c.0.s8 %v1939
      %v1941 = vlaneseq
      %v1942 = vshrl.u32 %v1941, 7
      %v1943 = vsub.s32 %v1940, %v1942
      %v1944 = vrot.slane %v1936, %v1943
      %v1946 = vunpack.c.l.s4 1983009808
      %v1947 = vunpack.c.0.s8 %v1946
      %v1948 = vlaneseq
      %v1949 = vshrl.u32 %v1948, 7
      %v1950 = vsub.s32 %v1947, %v1949
      %v1951 = vrot.slane %v1937, %v1950
      %v1952 = vcombine.low %v1351, %v1463
      %v1953 = vcombine.high %v1351, %v1463
      %v1955 = vunpack.c.l.s4 1983009808
      %v1956 = vunpack.c.0.s8 %v1955
      %v1957 = vlaneseq
      %v1958 = vshrl.u32 %v1957, 7
      %v1959 = vsub.s32 %v1956, %v1958
      %v1960 = vrot.slane %v1952, %v1959
      %v1962 = vunpack.c.l.s4 1983009808
      %v1963 = vunpack.c.0.s8 %v1962
      %v1964 = vlaneseq
      %v1965 = vshrl.u32 %v1964, 7
      %v1966 = vsub.s32 %v1963, %v1965
      %v1967 = vrot.slane %v1953, %v1966
      %v1968 = vcombine.low %v1912, %v1928
      %v1969 = vcombine.high %v1912, %v1928
      %v1971 = vunpack.c.l.s4 1934713408
      %v1972 = vunpack.c.0.s8 %v1971
      %v1973 = vlaneseq
      %v1974 = vshrl.u32 %v1973, 7
      %v1975 = vsub.s32 %v1972, %v1974
      %v1976 = vrot.slane %v1968, %v1975
      %v1978 = vunpack.c.l.s4 1934713408
      %v1979 = vunpack.c.0.s8 %v1978
      %v1980 = vlaneseq
      %v1981 = vshrl.u32 %v1980, 7
      %v1982 = vsub.s32 %v1979, %v1981
      %v1983 = vrot.slane %v1969, %v1982
      %v1984 = vcombine.low %v1919, %v1935
      %v1985 = vcombine.high %v1919, %v1935
      %v1987 = vunpack.c.l.s4 1934713408
      %v1988 = vunpack.c.0.s8 %v1987
      %v1989 = vlaneseq
      %v1990 = vshrl.u32 %v1989, 7
      %v1991 = vsub.s32 %v1988, %v1990
      %v1992 = vrot.slane %v1984, %v1991
      %v1994 = vunpack.c.l.s4 1934713408
      %v1995 = vunpack.c.0.s8 %v1994
      %v1996 = vlaneseq
      %v1997 = vshrl.u32 %v1996, 7
      %v1998 = vsub.s32 %v1995, %v1997
      %v1999 = vrot.slane %v1985, %v1998
      %v2000 = vcombine.low %v1944, %v1960
      %v2001 = vcombine.high %v1944, %v1960
      %v2003 = vunpack.c.l.s4 1934713408
      %v2004 = vunpack.c.0.s8 %v2003
      %v2005 = vlaneseq
      %v2006 = vshrl.u32 %v2005, 7
      %v2007 = vsub.s32 %v2004, %v2006
      %v2008 = vrot.slane %v2000, %v2007
      %v2010 = vunpack.c.l.s4 1934713408
      %v2011 = vunpack.c.0.s8 %v2010
      %v2012 = vlaneseq
      %v2013 = vshrl.u32 %v2012, 7
      %v2014 = vsub.s32 %v2011, %v2013
      %v2015 = vrot.slane %v2001, %v2014
      %v2016 = vcombine.low %v1951, %v1967
      %v2017 = vcombine.high %v1951, %v1967
      %v2019 = vunpack.c.l.s4 1934713408
      %v2020 = vunpack.c.0.s8 %v2019
      %v2021 = vlaneseq
      %v2022 = vshrl.u32 %v2021, 7
      %v2023 = vsub.s32 %v2020, %v2022
      %v2024 = vrot.slane %v2016, %v2023
      %v2026 = vunpack.c.l.s4 1934713408
      %v2027 = vunpack.c.0.s8 %v2026
      %v2028 = vlaneseq
      %v2029 = vshrl.u32 %v2028, 7
      %v2030 = vsub.s32 %v2027, %v2029
      %v2031 = vrot.slane %v2017, %v2030
      %v2032 = vcombine.low %v1976, %v2008
      %v2033 = vcombine.high %v1976, %v2008
      %v2034 = vcombine.low %v1983, %v2015
      %v2035 = vcombine.high %v1983, %v2015
      %v2036 = vcombine.low %v1992, %v2024
      %v2037 = vcombine.high %v1992, %v2024
      %v2038 = vcombine.low %v1999, %v2031
      %v2039 = vcombine.high %v1999, %v2031
      %vm2040 = vcmask 15360
      %v2041 = vsel %vm2040, %v1624, -inf
      %2042 = vmax.xlane.f32.xlu0 %v2041
      %v2043 = vpop.xlane.xlu0 %2042
      %v2044 = vsel %vm2040, %v1625, -inf
      %2045 = vmax.xlane.f32.xlu0 %v2044
      %v2046 = vpop.xlane.xlu0 %2045
      %v2047 = vsel %vm2040, %v1626, -inf
      %2048 = vmax.xlane.f32.xlu0 %v2047
      %v2049 = vpop.xlane.xlu0 %2048
      %v2050 = vsel %vm2040, %v1627, -inf
      %2051 = vmax.xlane.f32.xlu0 %v2050
      %v2052 = vpop.xlane.xlu0 %2051
      %v2053 = vsel %vm2040, %v1628, -inf
      %2054 = vmax.xlane.f32.xlu0 %v2053
      %v2055 = vpop.xlane.xlu0 %2054
      %v2056 = vsel %vm2040, %v1629, -inf
      %2057 = vmax.xlane.f32.xlu0 %v2056
      %v2058 = vpop.xlane.xlu0 %2057
      %v2059 = vsel %vm2040, %v1630, -inf
      %2060 = vmax.xlane.f32.xlu0 %v2059
      %v2061 = vpop.xlane.xlu0 %2060
      %v2062 = vsel %vm2040, %v1631, -inf
      %2063 = vmax.xlane.f32.xlu0 %v2062
      %v2064 = vpop.xlane.xlu0 %2063
      %v2065 = vsel %vm2040, %v1760, -inf
      %2066 = vmax.xlane.f32.xlu0 %v2065
      %v2067 = vpop.xlane.xlu0 %2066
      %v2068 = vsel %vm2040, %v1761, -inf
      %2069 = vmax.xlane.f32.xlu0 %v2068
      %v2070 = vpop.xlane.xlu0 %2069
      %v2071 = vsel %vm2040, %v1762, -inf
      %2072 = vmax.xlane.f32.xlu0 %v2071
      %v2073 = vpop.xlane.xlu0 %2072
      %v2074 = vsel %vm2040, %v1763, -inf
      %2075 = vmax.xlane.f32.xlu0 %v2074
      %v2076 = vpop.xlane.xlu0 %2075
      %v2077 = vsel %vm2040, %v1764, -inf
      %2078 = vmax.xlane.f32.xlu0 %v2077
      %v2079 = vpop.xlane.xlu0 %2078
      %v2080 = vsel %vm2040, %v1765, -inf
      %2081 = vmax.xlane.f32.xlu0 %v2080
      %v2082 = vpop.xlane.xlu0 %2081
      %v2083 = vsel %vm2040, %v1766, -inf
      %2084 = vmax.xlane.f32.xlu0 %v2083
      %v2085 = vpop.xlane.xlu0 %2084
      %v2086 = vsel %vm2040, %v1767, -inf
      %2087 = vmax.xlane.f32.xlu0 %v2086
      %v2088 = vpop.xlane.xlu0 %2087
      %v2089 = vsel %vm2040, %v1896, -inf
      %2090 = vmax.xlane.f32.xlu0 %v2089
      %v2091 = vpop.xlane.xlu0 %2090
      %v2092 = vsel %vm2040, %v1897, -inf
      %2093 = vmax.xlane.f32.xlu0 %v2092
      %v2094 = vpop.xlane.xlu0 %2093
      %v2095 = vsel %vm2040, %v1898, -inf
      %2096 = vmax.xlane.f32.xlu0 %v2095
      %v2097 = vpop.xlane.xlu0 %2096
      %v2098 = vsel %vm2040, %v1899, -inf
      %2099 = vmax.xlane.f32.xlu0 %v2098
      %v2100 = vpop.xlane.xlu0 %2099
      %v2101 = vsel %vm2040, %v1900, -inf
      %2102 = vmax.xlane.f32.xlu0 %v2101
      %v2103 = vpop.xlane.xlu0 %2102
      %v2104 = vsel %vm2040, %v1901, -inf
      %2105 = vmax.xlane.f32.xlu0 %v2104
      %v2106 = vpop.xlane.xlu0 %2105
      %v2107 = vsel %vm2040, %v1902, -inf
      %2108 = vmax.xlane.f32.xlu0 %v2107
      %v2109 = vpop.xlane.xlu0 %2108
      %v2110 = vsel %vm2040, %v1903, -inf
      %2111 = vmax.xlane.f32.xlu0 %v2110
      %v2112 = vpop.xlane.xlu0 %2111
      %v2113 = vsel %vm2040, %v2032, -inf
      %2114 = vmax.xlane.f32.xlu0 %v2113
      %v2115 = vpop.xlane.xlu0 %2114
      %v2116 = vsel %vm2040, %v2033, -inf
      %2117 = vmax.xlane.f32.xlu0 %v2116
      %v2118 = vpop.xlane.xlu0 %2117
      %v2119 = vsel %vm2040, %v2034, -inf
      %2120 = vmax.xlane.f32.xlu0 %v2119
      %v2121 = vpop.xlane.xlu0 %2120
      %v2122 = vsel %vm2040, %v2035, -inf
      %2123 = vmax.xlane.f32.xlu0 %v2122
      %v2124 = vpop.xlane.xlu0 %2123
      %v2125 = vsel %vm2040, %v2036, -inf
      %2126 = vmax.xlane.f32.xlu0 %v2125
      %v2127 = vpop.xlane.xlu0 %2126
      %v2128 = vsel %vm2040, %v2037, -inf
      %2129 = vmax.xlane.f32.xlu0 %v2128
      %v2130 = vpop.xlane.xlu0 %2129
      %v2131 = vsel %vm2040, %v2038, -inf
      %2132 = vmax.xlane.f32.xlu0 %v2131
      %v2133 = vpop.xlane.xlu0 %2132
      %v2134 = vsel %vm2040, %v2039, -inf
      %2135 = vmax.xlane.f32.xlu0 %v2134
      %v2136 = vpop.xlane.xlu0 %2135
      %v2169 = vlaneseq
      %v2170 = vand.u32 %v2169, 127
      %v2171 = vlaneseq
      %v2172 = vshrl.u32 %v2171, 7
      %v2173 = vsub.s32 %v2170, %v2172
      %v2174 = vrot.slane %v2043, %v2173
      %v2175 = vlaneseq
      %v2176 = vshrl.u32 %v2175, 7
      %v2177 = vsub.s32 %v2170, %v2176
      %v2178 = vrot.slane %v2046, %v2177
      %v2179 = vlaneseq
      %v2180 = vshrl.u32 %v2179, 7
      %v2181 = vsub.s32 %v2170, %v2180
      %v2182 = vrot.slane %v2049, %v2181
      %v2183 = vlaneseq
      %v2184 = vshrl.u32 %v2183, 7
      %v2185 = vsub.s32 %v2170, %v2184
      %v2186 = vrot.slane %v2052, %v2185
      %v2187 = vlaneseq
      %v2188 = vshrl.u32 %v2187, 7
      %v2189 = vsub.s32 %v2170, %v2188
      %v2190 = vrot.slane %v2055, %v2189
      %v2191 = vlaneseq
      %v2192 = vshrl.u32 %v2191, 7
      %v2193 = vsub.s32 %v2170, %v2192
      %v2194 = vrot.slane %v2058, %v2193
      %v2195 = vlaneseq
      %v2196 = vshrl.u32 %v2195, 7
      %v2197 = vsub.s32 %v2170, %v2196
      %v2198 = vrot.slane %v2061, %v2197
      %v2199 = vlaneseq
      %v2200 = vshrl.u32 %v2199, 7
      %v2201 = vsub.s32 %v2170, %v2200
      %v2202 = vrot.slane %v2064, %v2201
      %v2203 = vlaneseq
      %v2204 = vshrl.u32 %v2203, 7
      %v2205 = vsub.s32 %v2170, %v2204
      %v2206 = vrot.slane %v2067, %v2205
      %v2207 = vlaneseq
      %v2208 = vshrl.u32 %v2207, 7
      %v2209 = vsub.s32 %v2170, %v2208
      %v2210 = vrot.slane %v2070, %v2209
      %v2211 = vlaneseq
      %v2212 = vshrl.u32 %v2211, 7
      %v2213 = vsub.s32 %v2170, %v2212
      %v2214 = vrot.slane %v2073, %v2213
      %v2215 = vlaneseq
      %v2216 = vshrl.u32 %v2215, 7
      %v2217 = vsub.s32 %v2170, %v2216
      %v2218 = vrot.slane %v2076, %v2217
      %v2219 = vlaneseq
      %v2220 = vshrl.u32 %v2219, 7
      %v2221 = vsub.s32 %v2170, %v2220
      %v2222 = vrot.slane %v2079, %v2221
      %v2223 = vlaneseq
      %v2224 = vshrl.u32 %v2223, 7
      %v2225 = vsub.s32 %v2170, %v2224
      %v2226 = vrot.slane %v2082, %v2225
      %v2227 = vlaneseq
      %v2228 = vshrl.u32 %v2227, 7
      %v2229 = vsub.s32 %v2170, %v2228
      %v2230 = vrot.slane %v2085, %v2229
      %v2231 = vlaneseq
      %v2232 = vshrl.u32 %v2231, 7
      %v2233 = vsub.s32 %v2170, %v2232
      %v2234 = vrot.slane %v2088, %v2233
      %v2235 = vlaneseq
      %v2236 = vshrl.u32 %v2235, 7
      %v2237 = vsub.s32 %v2170, %v2236
      %v2238 = vrot.slane %v2091, %v2237
      %v2239 = vlaneseq
      %v2240 = vshrl.u32 %v2239, 7
      %v2241 = vsub.s32 %v2170, %v2240
      %v2242 = vrot.slane %v2094, %v2241
      %v2243 = vlaneseq
      %v2244 = vshrl.u32 %v2243, 7
      %v2245 = vsub.s32 %v2170, %v2244
      %v2246 = vrot.slane %v2097, %v2245
      %v2247 = vlaneseq
      %v2248 = vshrl.u32 %v2247, 7
      %v2249 = vsub.s32 %v2170, %v2248
      %v2250 = vrot.slane %v2100, %v2249
      %v2251 = vlaneseq
      %v2252 = vshrl.u32 %v2251, 7
      %v2253 = vsub.s32 %v2170, %v2252
      %v2254 = vrot.slane %v2103, %v2253
      %v2255 = vlaneseq
      %v2256 = vshrl.u32 %v2255, 7
      %v2257 = vsub.s32 %v2170, %v2256
      %v2258 = vrot.slane %v2106, %v2257
      %v2259 = vlaneseq
      %v2260 = vshrl.u32 %v2259, 7
      %v2261 = vsub.s32 %v2170, %v2260
      %v2262 = vrot.slane %v2109, %v2261
      %v2263 = vlaneseq
      %v2264 = vshrl.u32 %v2263, 7
      %v2265 = vsub.s32 %v2170, %v2264
      %v2266 = vrot.slane %v2112, %v2265
      %v2267 = vlaneseq
      %v2268 = vshrl.u32 %v2267, 7
      %v2269 = vsub.s32 %v2170, %v2268
      %v2270 = vrot.slane %v2115, %v2269
      %v2271 = vlaneseq
      %v2272 = vshrl.u32 %v2271, 7
      %v2273 = vsub.s32 %v2170, %v2272
      %v2274 = vrot.slane %v2118, %v2273
      %v2275 = vlaneseq
      %v2276 = vshrl.u32 %v2275, 7
      %v2277 = vsub.s32 %v2170, %v2276
      %v2278 = vrot.slane %v2121, %v2277
      %v2279 = vlaneseq
      %v2280 = vshrl.u32 %v2279, 7
      %v2281 = vsub.s32 %v2170, %v2280
      %v2282 = vrot.slane %v2124, %v2281
      %v2283 = vlaneseq
      %v2284 = vshrl.u32 %v2283, 7
      %v2285 = vsub.s32 %v2170, %v2284
      %v2286 = vrot.slane %v2127, %v2285
      %v2287 = vlaneseq
      %v2288 = vshrl.u32 %v2287, 7
      %v2289 = vsub.s32 %v2170, %v2288
      %v2290 = vrot.slane %v2130, %v2289
      %v2291 = vlaneseq
      %v2292 = vshrl.u32 %v2291, 7
      %v2293 = vsub.s32 %v2170, %v2292
      %v2294 = vrot.slane %v2133, %v2293
      %v2295 = vlaneseq
      %v2296 = vshrl.u32 %v2295, 7
      %v2297 = vsub.s32 %v2170, %v2296
      %v2298 = vrot.slane %v2136, %v2297
      %v2299 = vsel %vm1010, %v2178, %v2174
      %v2300 = vsel %vm1013, %v2182, %v2299
      %v2301 = vsel %vm1016, %v2186, %v2300
      %v2302 = vsel %vm1019, %v2190, %v2301
      %v2303 = vsel %vm1022, %v2194, %v2302
      %v2304 = vsel %vm1025, %v2198, %v2303
      %v2305 = vsel %vm1028, %v2202, %v2304
      %v2306 = vsel %vm1010, %v2210, %v2206
      %v2307 = vsel %vm1013, %v2214, %v2306
      %v2308 = vsel %vm1016, %v2218, %v2307
      %v2309 = vsel %vm1019, %v2222, %v2308
      %v2310 = vsel %vm1022, %v2226, %v2309
      %v2311 = vsel %vm1025, %v2230, %v2310
      %v2312 = vsel %vm1028, %v2234, %v2311
      %v2313 = vsel %vm1010, %v2242, %v2238
      %v2314 = vsel %vm1013, %v2246, %v2313
      %v2315 = vsel %vm1016, %v2250, %v2314
      %v2316 = vsel %vm1019, %v2254, %v2315
      %v2317 = vsel %vm1022, %v2258, %v2316
      %v2318 = vsel %vm1025, %v2262, %v2317
      %v2319 = vsel %vm1028, %v2266, %v2318
      %v2320 = vsel %vm1010, %v2274, %v2270
      %v2321 = vsel %vm1013, %v2278, %v2320
      %v2322 = vsel %vm1016, %v2282, %v2321
      %v2323 = vsel %vm1019, %v2286, %v2322
      %v2324 = vsel %vm1022, %v2290, %v2323
      %v2325 = vsel %vm1025, %v2294, %v2324
      %v2326 = vsel %vm1028, %v2298, %v2325
      %vm2331 = vcmask 64512
      %2332 = vst.msk [vmem:[%s118] sm:$0xff] %vm2331, %v2305
      %2333 = vst.msk [vmem:[%s118 + $0x8] sm:$0xff] %vm2331, %v2312
      %2334 = vst.msk [vmem:[%s118 + $0x10] sm:$0xff] %vm2331, %v2319
      %2335 = vst.msk [vmem:[%s118 + $0x18] sm:$0xff] %vm2331, %v2326
      %s2336 = smul.u32 4, %s12
      %p2337 = scmp.lt.s32.totalorder %s2336, 7
      %s2338 = scalar_select %p2337, %s2336, 7
      %s2339 = smul.addr %s2338, 8
      %s2340 = scalar_lea.vmem %s1, %s2339
      // Predicated region
      $region25: #{tpu_custom_call.1} parent=23 // pred_check
        %p2341 = pneg %p56
      $region26: #{tpu_custom_call.1} parent=23 // pred_check_branch
        %2343 = sbr.rel (%p2341) target = $region28
      $region27: #{tpu_custom_call.1} parent=23 // pred_region
        %s2344 = smul.u32 4, %s12
      $region28: #{tpu_custom_call.1} parent=23 // pred_fallthru
        _
    $region24: #{tpu_custom_call.1} parent=5 // pred_fallthru
      _
    %p2345 = scmp.le.s32.totalorder 2, %s7
    // Predicated region
    $region29: #{tpu_custom_call.1} parent=5 // pred_check
      %p2346 = pneg %p2345
    $region30: #{tpu_custom_call.1} parent=5 // pred_check_branch
      %2348 = sbr.rel (%p2346) target = $region32
    $region31: #{tpu_custom_call.1} parent=5 // pred_region
      %s2349 = ssub.s32 %s7, 2
      // Predicated region
      $region33: #{tpu_custom_call.1} parent=31 // pred_check
        %p2350 = pneg %p62
      $region34: #{tpu_custom_call.1} parent=31 // pred_check_branch
        %2352 = sbr.rel (%p2350) target = $region36
      $region35: #{tpu_custom_call.1} parent=31 // pred_region
        %s2353 = smul.u32 4, %s13
        %p2354 = scmp.lt.s32.totalorder %s2353, 7
        %s2355 = scalar_select %p2354, %s2353, 7
        %s2356 = smul.addr %s2355, 8
        %s2357 = scalar_lea.vmem %s1, %s2356
      $region36: #{tpu_custom_call.1} parent=31 // pred_fallthru
        _
    $region32: #{tpu_custom_call.1} parent=5 // pred_fallthru
      _
  $region6: #{tpu_custom_call.1} parent=0 // loop_footer
    %s11 = sadd.s32 1, %s7
  $region7: #{tpu_custom_call.1} parent=0 // loop_footer_branch
    %6 = sbr.rel target = $region3
  $region8: #{tpu_custom_call.1} parent=0 // loop_exit
    _

</llo_original>
